<compile_context>
chip_gen: v5e
topology: v5e:2x2
jax: 0.10.0
libtpu: 0.0.40
codegen_flags: <defaults>
</compile_context>

<pallas_src>
import jax
import jax.numpy as jnp
from jax.experimental import pallas as pl
from jax.experimental.pallas import tpu as pltpu


# --------------------------------------------------------------------------------------
# Kernel
# --------------------------------------------------------------------------------------
def _deepmil_kernel(x_ref, mask_ref, w_emb_ref, b_emb_ref, w_att_ref, b_att_ref,
                    h_ref, w_mlp_ref, b_mlp_ref, logits_ref, attn_ref):
    BT, N, F = x_ref.shape
    D = w_emb_ref.shape[1]

    # ---- TilesMLP (single Linear): one big (BT*N, F) @ (F, D) MXU matmul ----
    # Layout-free reshape: the wrapper pads N to the sublane tile (8 f32 / 16 bf16).
    x_flat = x_ref[...].reshape(BT * N, F)
    emb_flat = (jnp.dot(x_flat, w_emb_ref[...], preferred_element_type=jnp.float32)
                + b_emb_ref[...])                                     # (BT*N, D) f32
    emb = emb_flat.reshape(BT, N, D)                                  # (BT, N, D)

    # ---- BasicAttention logits, lane-dense (BT, 1, N). 1/temperature pre-folded. ----
    w_att_b = jnp.broadcast_to(w_att_ref[...].reshape(1, 1, D), (BT, 1, D))
    att = jnp.einsum('bqd,bnd->bqn', w_att_b, emb,
                     preferred_element_type=jnp.float32)              # (BT, 1, N)
    att = att + b_att_ref[...]

    # masked softmax over the tile axis (lane axis). Exact normalization: attn is a
    # user-visible output and must sum to 1 per bag.
    # NOTE: a fully-masked bag yields NaN here -- identical to the PyTorch reference.
    mask = mask_ref[...]                                              # (BT, 1, N), 1.0 == padded
    att = jnp.where(mask > 0.5, -jnp.inf, att)
    m = jnp.max(att, axis=-1, keepdims=True)
    e = jnp.exp(att - m)
    attn = e / jnp.sum(e, axis=-1, keepdims=True)                     # (BT, 1, N)
    attn_ref[...] = attn.reshape(BT, N)                               # sublane-dense 2-D store

    # ---- attention pooling on the MXU: (BT,1,N) @ (BT,N,D) -> (BT,1,D) ----
    scaled = jnp.einsum('bqn,bnd->bqd', attn, emb,
                        preferred_element_type=jnp.float32)
    scaled = scaled.reshape(BT, D) + h_ref[...]                       # + h ; dropout == identity

    # ---- classifier MLP (single Linear): one (BT, D) @ (D, OUT) matmul ----
    logits_ref[...] = (jnp.dot(scaled, w_mlp_ref[...], preferred_element_type=jnp.float32)
                       + b_mlp_ref[...])


# --------------------------------------------------------------------------------------
# Generation-aware policy & block sizing
# --------------------------------------------------------------------------------------
_MIB = 1024 * 1024


def _tpu_policy():
    """Returns (picker_budget_bytes, vmem_limit_cap_bytes, num_tensorcores, max_rows)."""
    kind = ""
    try:
        kind = jax.devices()[0].device_kind.lower()
    except Exception:
        pass
    if "v7" in kind:
        # v7x: 64 MiB VMEM per TC, 2 TCs/chip -> leave compiler headroom, prefer even grids.
        return 40 * _MIB, 52 * _MIB, 2, 4096
    if "v5" in kind or "v6" in kind:
        # v5e / v6e: 128 MiB VMEM, 1 TC -> use most of it, prefer grid == 1 (max BT).
        return 80 * _MIB, 100 * _MIB, 1, 8192
    # Unknown backend (e.g. interpret mode): conservative v7x-like budgets.
    return 36 * _MIB, 48 * _MIB, 2, 4096


def _vmem_estimate_bytes(bt, n, f, d, out, x_itemsize, weight_bufs=1):
    f32 = 4
    streamed = 2 * (bt * n * f * x_itemsize + bt * n * f32)           # x + mask (double-buffered)
    outputs = 2 * (bt * n * f32 + bt * out * f32)                     # attn + logits (double-buffered)
    weights = weight_bufs * (f * d * x_itemsize + (3 * d + d * out + out + 1) * f32)
    interm = 2 * bt * n * d * f32 + 6 * bt * n * f32 + 4 * bt * d * f32
    return streamed + outputs + weights + interm


def _pick_bags_per_step(b, n, f, d, out, x_itemsize, budget, max_rows, num_cores):
    """Largest divisor of B that fits the VMEM budget, keeps 2-D output blocks
    sublane-aligned (BT == B or BT % 8 == 0), and respects the per-generation grid policy."""
    aligned = [bt for bt in range(1, b + 1)
               if b % bt == 0 and (bt == b or bt % 8 == 0)]
    fits = [bt for bt in aligned
            if bt * n <= max_rows
            and _vmem_estimate_bytes(bt, n, f, d, out, x_itemsize) <= budget]
    pool = fits if fits else [min(aligned)]
    if num_cores >= 2:
        # v7x: prefer a grid length divisible by the core count so no TC idles on a tail step.
        even = [bt for bt in pool if (b // bt) % num_cores == 0]
        if even:
            pool = even
    return max(pool)


# --------------------------------------------------------------------------------------
# Wrapper
# --------------------------------------------------------------------------------------
def deepmil_forward(x, mask, params, temperature=1.0, *,
                    bags_per_step=None, compute_dtype=jnp.bfloat16):
    """x: (B, N, F); mask: (B, N, 1) bool/float (True/1.0 = padded).
    Returns (logits (B, OUT), attention_weights (B, N))."""
    B, N, F = x.shape
    D = params["w_emb"].shape[1]
    OUT = params["w_mlp"].shape[1]
    inv_temp = 1.0 / float(temperature)

    itemsize = jnp.dtype(compute_dtype).itemsize
    sublane = 16 if itemsize == 2 else 8

    # Pad N to the sublane tile so the in-kernel (BT,N,F)->(BT*N,F) reshape is layout-free.
    x_c = x.astype(compute_dtype)
    mask_f = mask.astype(jnp.float32)                                 # (B, N, 1)
    Np = ((N + sublane - 1) // sublane) * sublane
    if Np != N:
        x_c = jnp.pad(x_c, ((0, 0), (0, Np - N), (0, 0)))
        mask_f = jnp.pad(mask_f, ((0, 0), (0, Np - N), (0, 0)), constant_values=1.0)
    mask_lane = mask_f.reshape(B, 1, Np)                              # lane-dense mask

    # Fold 1/temperature into the attention weight & bias (host-side constants).
    w_emb = params["w_emb"].astype(compute_dtype)
    b_emb = params["b_emb"].astype(jnp.float32)
    w_att_row = (params["w_att"].reshape(1, D) * inv_temp).astype(jnp.float32)
    b_att = (params["b_att"] * inv_temp).astype(jnp.float32)
    h = params["h"].astype(jnp.float32)
    w_mlp = params["w_mlp"].astype(jnp.float32)
    b_mlp = params["b_mlp"].astype(jnp.float32)

    budget, cap, num_cores, max_rows = _tpu_policy()
    if bags_per_step is None:
        bags_per_step = _pick_bags_per_step(B, Np, F, D, OUT, itemsize,
                                            budget, max_rows, num_cores)
    BT = bags_per_step
    assert B % BT == 0 and (BT == B or BT % 8 == 0), "bags_per_step must divide B and be sublane-aligned"
    grid = (B // BT,)

    est = _vmem_estimate_bytes(BT, Np, F, D, OUT, itemsize)
    vmem_limit = int(min(max(2 * est, 16 * _MIB), cap))

    out_shape = (
        jax.ShapeDtypeStruct((B, OUT), jnp.float32),
        jax.ShapeDtypeStruct((B, Np), jnp.float32),
    )
    args = (x_c, mask_lane, w_emb, b_emb, w_att_row, b_att, h, w_mlp, b_mlp)

    def run(single_buffer_weights):
        # Resident weights never change across the grid: single-buffer them to halve
        # their VMEM footprint (most valuable on v7x's 64 MiB VMEM).
        wkw = {"pipeline_mode": pl.Buffered(1)} if single_buffer_weights else {}
        in_specs = [
            pl.BlockSpec((BT, Np, F), lambda b: (b, 0, 0)),           # x (streamed)
            pl.BlockSpec((BT, 1, Np), lambda b: (b, 0, 0)),           # mask (lane-dense, streamed)
            pl.BlockSpec((F, D), lambda b: (0, 0), **wkw),            # w_emb
            pl.BlockSpec((1, D), lambda b: (0, 0), **wkw),            # b_emb
            pl.BlockSpec((1, D), lambda b: (0, 0), **wkw),            # w_att (row, /temperature)
            pl.BlockSpec((1, 1), lambda b: (0, 0), **wkw),            # b_att (/temperature)
            pl.BlockSpec((1, D), lambda b: (0, 0), **wkw),            # h
            pl.BlockSpec((D, OUT), lambda b: (0, 0), **wkw),          # w_mlp
            pl.BlockSpec((1, OUT), lambda b: (0, 0), **wkw),          # b_mlp
        ]
        out_specs = [
            pl.BlockSpec((BT, OUT), lambda b: (b, 0)),                # logits (2-D, sublane-dense)
            pl.BlockSpec((BT, Np), lambda b: (b, 0)),                 # attention weights (2-D)
        ]
        grid_spec = pltpu.PrefetchScalarGridSpec(
            num_scalar_prefetch=0, grid=grid, in_specs=in_specs, out_specs=out_specs)
        return pl.pallas_call(
            _deepmil_kernel,
            out_shape=out_shape,
            grid_spec=grid_spec,
            compiler_params=pltpu.CompilerParams(
                dimension_semantics=("parallel",),
                vmem_limit_bytes=vmem_limit,
            ),
        )(*args)

    try:
        logits, attn = run(True)
    except Exception:
        # pl.Buffered(1) (single-buffering) may be rejected by some jax/Mosaic versions;
        # fall back to default double-buffered weights.
        logits, attn = run(False)

    return logits, attn[:, :N]


# --------------------------------------------------------------------------------------
# Pure-JAX reference
# --------------------------------------------------------------------------------------
def deepmil_reference(x, mask, params, temperature=1.0):
    m = mask.astype(jnp.float32)
    tiles_emb = jnp.einsum("bnf,fd->bnd", x, params["w_emb"]) + params["b_emb"]
    att = (jnp.einsum("bnd,do->bno", tiles_emb, params["w_att"])
           + params["b_att"]) / temperature
    att = jnp.where(m > 0.5, -jnp.inf, att)
    attn = jax.nn.softmax(att, axis=1)
    scaled = jnp.einsum("bno,bnd->bd", attn, tiles_emb)
    scaled = scaled + params["h"][0]
    logits = scaled @ params["w_mlp"] + params["b_mlp"][0]
    return logits, attn[..., 0]


def xavier_uniform(key, fan_in, fan_out):
    limit = jnp.sqrt(6.0 / (fan_in + fan_out))
    return jax.random.uniform(key, (fan_in, fan_out), jnp.float32, -limit, limit)


if __name__ == "__main__":
    B, N_TILES, IN_FEATURES = 16, 16, 32
    D_MODEL, OUT_FEATURES = 128, 1
    TEMPERATURE = 1.0

    key = jax.random.PRNGKey(0)
    k_x, k_emb, k_att, k_mlp, k_h = jax.random.split(key, 5)

    x = jax.random.normal(k_x, (B, N_TILES, IN_FEATURES), jnp.float32)
    # mask: True for padded tiles; pad the last 3 tiles of bag 0 and the last tile of bag 1
    mask = jnp.zeros((B, N_TILES, 1), jnp.bool_)
    mask = mask.at[0, -3:, 0].set(True).at[1, -1:, 0].set(True)

    params = {
        "w_emb": xavier_uniform(k_emb, IN_FEATURES, D_MODEL),
        "b_emb": jnp.zeros((1, D_MODEL), jnp.float32),
        "w_att": xavier_uniform(k_att, D_MODEL, 1),
        "b_att": jnp.zeros((1, 1), jnp.float32),
        "h": jax.random.normal(k_h, (1, D_MODEL), jnp.float32),
        "w_mlp": xavier_uniform(k_mlp, D_MODEL, OUT_FEATURES),
        "b_mlp": jnp.zeros((1, OUT_FEATURES), jnp.float32),
    }

    ref_logits, ref_attn = deepmil_reference(x, mask, params, TEMPERATURE)

    # ---- f32 run: tight correctness check (exact softmax normalization) ----
    logits, attn = deepmil_forward(x, mask, params, TEMPERATURE, compute_dtype=jnp.float32)
    jax.block_until_ready((logits, attn))
    assert logits.shape == (B, OUT_FEATURES)
    assert attn.shape == (B, N_TILES)
    assert jnp.allclose(logits, ref_logits, atol=1e-4, rtol=1e-4), \
        float(jnp.max(jnp.abs(logits - ref_logits)))
    assert jnp.allclose(attn, ref_attn, atol=1e-4, rtol=1e-4), \
        float(jnp.max(jnp.abs(attn - ref_attn)))
    assert jnp.allclose(attn.sum(axis=-1), 1.0, atol=1e-3)

    # ---- bf16 run (default compute dtype): halves HBM traffic for x / W_emb ----
    logits_bf, attn_bf = deepmil_forward(x, mask, params, TEMPERATURE)  # compute_dtype=bf16
    jax.block_until_ready((logits_bf, attn_bf))
    assert jnp.allclose(logits_bf, ref_logits, atol=5e-2, rtol=5e-2), \
        float(jnp.max(jnp.abs(logits_bf - ref_logits)))
    assert jnp.allclose(attn_bf, ref_attn, atol=1e-2, rtol=1e-2), \
        float(jnp.max(jnp.abs(attn_bf - ref_attn)))
    assert jnp.allclose(attn_bf.sum(axis=-1), 1.0, atol=1e-3)

    print("KERNEL_OK")
</pallas_src>

<mosaic_0001>
module attributes {stable_mosaic.version = 11 : i64} {
  func.func @_deepmil_kernel(%arg0: i32, %arg1: memref<8x16x32xf32, #tpu.memory_space<vmem>>, %arg2: memref<8x1x16xf32, #tpu.memory_space<vmem>>, %arg3: memref<32x128xf32, #tpu.memory_space<vmem>>, %arg4: memref<1x128xf32, #tpu.memory_space<vmem>>, %arg5: memref<1x128xf32, #tpu.memory_space<vmem>>, %arg6: memref<1x1xf32, #tpu.memory_space<vmem>>, %arg7: memref<1x128xf32, #tpu.memory_space<vmem>>, %arg8: memref<128x1xf32, #tpu.memory_space<vmem>>, %arg9: memref<1x1xf32, #tpu.memory_space<vmem>>, %arg10: memref<8x1xf32, #tpu.memory_space<vmem>>, %arg11: memref<8x16xf32, #tpu.memory_space<vmem>>) attributes {dimension_semantics = [#tpu.dimension_semantics<parallel>], iteration_bounds = array<i64: 2>, scalar_prefetch = 0 : i64, scratch_operands = 0 : i64, tpu.core_type = #tpu.core_type<tc>, window_params = [{transform_indices = @transform_0, window_bounds = array<i64: 8, 16, 32>}, {transform_indices = @transform_1, window_bounds = array<i64: 8, 1, 16>}, {pipeline_mode = #tpu.pipeline_mode<synchronous>, transform_indices = @transform_2, window_bounds = array<i64: 32, 128>}, {pipeline_mode = #tpu.pipeline_mode<synchronous>, transform_indices = @transform_3, window_bounds = array<i64: 1, 128>}, {pipeline_mode = #tpu.pipeline_mode<synchronous>, transform_indices = @transform_4, window_bounds = array<i64: 1, 128>}, {pipeline_mode = #tpu.pipeline_mode<synchronous>, transform_indices = @transform_5, window_bounds = array<i64: 1, 1>}, {pipeline_mode = #tpu.pipeline_mode<synchronous>, transform_indices = @transform_6, window_bounds = array<i64: 1, 128>}, {pipeline_mode = #tpu.pipeline_mode<synchronous>, transform_indices = @transform_7, window_bounds = array<i64: 128, 1>}, {pipeline_mode = #tpu.pipeline_mode<synchronous>, transform_indices = @transform_8, window_bounds = array<i64: 1, 1>}, {transform_indices = @transform_9, window_bounds = array<i64: 8, 1>}, {transform_indices = @transform_10, window_bounds = array<i64: 8, 16>}]} {
    %c0 = arith.constant 0 : index
    %c0_0 = arith.constant 0 : index
    %c0_1 = arith.constant 0 : index
    %0 = vector.load %arg1[%c0, %c0_0, %c0_1] : memref<8x16x32xf32, #tpu.memory_space<vmem>>, vector<8x16x32xf32>
    %1 = vector.shape_cast %0 : vector<8x16x32xf32> to vector<128x32xf32>
    %c0_2 = arith.constant 0 : index
    %c0_3 = arith.constant 0 : index
    %2 = vector.load %arg3[%c0_2, %c0_3] : memref<32x128xf32, #tpu.memory_space<vmem>>, vector<32x128xf32>
    %cst = arith.constant dense<0.000000e+00> : vector<128x128xf32>
    %3 = tpu.matmul %1, %2, %cst {dimension_numbers = #tpu.dot_dimension_numbers<[1], [0], [0], [1], [0, 0, 1, 1], [], []>} : vector<128x32xf32>, vector<32x128xf32>, vector<128x128xf32> -> vector<128x128xf32>
    %c0_4 = arith.constant 0 : index
    %c0_5 = arith.constant 0 : index
    %4 = vector.load %arg4[%c0_4, %c0_5] : memref<1x128xf32, #tpu.memory_space<vmem>>, vector<1x128xf32>
    %5 = vector.broadcast %4 : vector<1x128xf32> to vector<128x128xf32>
    %6 = arith.addf %3, %5 : vector<128x128xf32>
    %7 = vector.shape_cast %6 : vector<128x128xf32> to vector<8x16x128xf32>
    %c0_6 = arith.constant 0 : index
    %c0_7 = arith.constant 0 : index
    %8 = vector.load %arg5[%c0_6, %c0_7] : memref<1x128xf32, #tpu.memory_space<vmem>>, vector<1x128xf32>
    %9 = vector.shape_cast %8 : vector<1x128xf32> to vector<1x1x128xf32>
    %10 = vector.shape_cast %9 : vector<1x1x128xf32> to vector<1x1x128xf32>
    %11 = vector.broadcast %10 : vector<1x1x128xf32> to vector<8x1x128xf32>
    "tpu.trace_start"() <{level = 10 : i32, message = "bqd,bnd->bqn"}> : () -> ()
    %cst_8 = arith.constant dense<0.000000e+00> : vector<8x1x16xf32>
    %12 = tpu.matmul %11, %7, %cst_8 {dimension_numbers = #tpu.dot_dimension_numbers<[2], [2], [1], [1], [0, 0, 0, 1, 1, 1], [0], [0]>} : vector<8x1x128xf32>, vector<8x16x128xf32>, vector<8x1x16xf32> -> vector<8x1x16xf32>
    "tpu.trace_stop"() : () -> ()
    %c0_9 = arith.constant 0 : index
    %c0_10 = arith.constant 0 : index
    %13 = vector.load %arg6[%c0_9, %c0_10] : memref<1x1xf32, #tpu.memory_space<vmem>>, vector<1x1xf32>
    %14 = vector.shape_cast %13 : vector<1x1xf32> to vector<1x1x1xf32>
    %15 = vector.broadcast %14 : vector<1x1x1xf32> to vector<8x1x16xf32>
    %16 = arith.addf %12, %15 : vector<8x1x16xf32>
    %c0_11 = arith.constant 0 : index
    %c0_12 = arith.constant 0 : index
    %c0_13 = arith.constant 0 : index
    %17 = vector.load %arg2[%c0_11, %c0_12, %c0_13] : memref<8x1x16xf32, #tpu.memory_space<vmem>>, vector<8x1x16xf32>
    %cst_14 = arith.constant 5.000000e-01 : f32
    %18 = vector.broadcast %cst_14 : f32 to vector<8x1x16xf32>
    %19 = arith.cmpf ogt, %17, %18 : vector<8x1x16xf32>
    %cst_15 = arith.constant 0xFF800000 : f32
    %20 = vector.broadcast %cst_15 : f32 to vector<8x1x16xf32>
    %21 = arith.select %19, %20, %16 : vector<8x1x16xi1>, vector<8x1x16xf32>
    %cst_16 = arith.constant dense<0xFF800000> : vector<8x1xf32>
    %22 = vector.multi_reduction <maximumf>, %21, %cst_16 [2] : vector<8x1x16xf32> to vector<8x1xf32>
    %23 = vector.shape_cast %22 : vector<8x1xf32> to vector<8x1x1xf32>
    %24 = vector.broadcast %23 : vector<8x1x1xf32> to vector<8x1x16xf32>
    %25 = arith.subf %21, %24 : vector<8x1x16xf32>
    %26 = math.exp %25 : vector<8x1x16xf32>
    %cst_17 = arith.constant dense<0.000000e+00> : vector<8x1xf32>
    %27 = vector.multi_reduction <add>, %26, %cst_17 [2] : vector<8x1x16xf32> to vector<8x1xf32>
    %28 = vector.shape_cast %27 : vector<8x1xf32> to vector<8x1x1xf32>
    %29 = vector.broadcast %28 : vector<8x1x1xf32> to vector<8x1x16xf32>
    %30 = arith.divf %26, %29 : vector<8x1x16xf32>
    %31 = vector.shape_cast %30 : vector<8x1x16xf32> to vector<8x16xf32>
    %c0_18 = arith.constant 0 : index
    %c0_19 = arith.constant 0 : index
    %32 = vector.load %arg11[%c0_18, %c0_19] : memref<8x16xf32, #tpu.memory_space<vmem>>, vector<8x16xf32>
    tpu.vector_store %arg11[%c0_18, %c0_19], %31 {strides = array<i32>} : memref<8x16xf32, #tpu.memory_space<vmem>>, vector<8x16xf32>,
    "tpu.trace_start"() <{level = 10 : i32, message = "bqn,bnd->bqd"}> : () -> ()
    %cst_20 = arith.constant dense<0.000000e+00> : vector<8x1x128xf32>
    %33 = tpu.matmul %30, %7, %cst_20 {dimension_numbers = #tpu.dot_dimension_numbers<[2], [1], [1], [2], [0, 0, 0, 1, 1, 2], [0], [0]>} : vector<8x1x16xf32>, vector<8x16x128xf32>, vector<8x1x128xf32> -> vector<8x1x128xf32>
    "tpu.trace_stop"() : () -> ()
    %34 = vector.shape_cast %33 : vector<8x1x128xf32> to vector<8x128xf32>
    %c0_21 = arith.constant 0 : index
    %c0_22 = arith.constant 0 : index
    %35 = vector.load %arg7[%c0_21, %c0_22] : memref<1x128xf32, #tpu.memory_space<vmem>>, vector<1x128xf32>
    %36 = vector.broadcast %35 : vector<1x128xf32> to vector<8x128xf32>
    %37 = arith.addf %34, %36 : vector<8x128xf32>
    %c0_23 = arith.constant 0 : index
    %c0_24 = arith.constant 0 : index
    %38 = vector.load %arg8[%c0_23, %c0_24] : memref<128x1xf32, #tpu.memory_space<vmem>>, vector<128x1xf32>
    %cst_25 = arith.constant dense<0.000000e+00> : vector<8x1xf32>
    %39 = tpu.matmul %37, %38, %cst_25 {dimension_numbers = #tpu.dot_dimension_numbers<[1], [0], [0], [1], [0, 0, 1, 1], [], []>} : vector<8x128xf32>, vector<128x1xf32>, vector<8x1xf32> -> vector<8x1xf32>
    %c0_26 = arith.constant 0 : index
    %c0_27 = arith.constant 0 : index
    %40 = vector.load %arg9[%c0_26, %c0_27] : memref<1x1xf32, #tpu.memory_space<vmem>>, vector<1x1xf32>
    %41 = vector.broadcast %40 : vector<1x1xf32> to vector<8x1xf32>
    %42 = arith.addf %39, %41 : vector<8x1xf32>
    %c0_28 = arith.constant 0 : index
    %c0_29 = arith.constant 0 : index
    %43 = vector.load %arg10[%c0_28, %c0_29] : memref<8x1xf32, #tpu.memory_space<vmem>>, vector<8x1xf32>
    tpu.vector_store %arg10[%c0_28, %c0_29], %42 {strides = array<i32>} : memref<8x1xf32, #tpu.memory_space<vmem>>, vector<8x1xf32>,
    return
  }
  func.func @transform_0(%arg0: i32) -> (i32, i32, i32) {
    %c0_i32 = arith.constant 0 : i32
    %c0_i32_0 = arith.constant 0 : i32
    %c0_i32_1 = arith.constant 0 : i32
    return %arg0, %c0_i32, %c0_i32_0 : i32, i32, i32
  }
  func.func @transform_1(%arg0: i32) -> (i32, i32, i32) {
    %c0_i32 = arith.constant 0 : i32
    %c0_i32_0 = arith.constant 0 : i32
    %c0_i32_1 = arith.constant 0 : i32
    return %arg0, %c0_i32, %c0_i32_0 : i32, i32, i32
  }
  func.func @transform_2(%arg0: i32) -> (i32, i32) {
    %c0_i32 = arith.constant 0 : i32
    %c0_i32_0 = arith.constant 0 : i32
    %c0_i32_1 = arith.constant 0 : i32
    return %c0_i32, %c0_i32_0 : i32, i32
  }
  func.func @transform_3(%arg0: i32) -> (i32, i32) {
    %c0_i32 = arith.constant 0 : i32
    %c0_i32_0 = arith.constant 0 : i32
    %c0_i32_1 = arith.constant 0 : i32
    return %c0_i32, %c0_i32_0 : i32, i32
  }
  func.func @transform_4(%arg0: i32) -> (i32, i32) {
    %c0_i32 = arith.constant 0 : i32
    %c0_i32_0 = arith.constant 0 : i32
    %c0_i32_1 = arith.constant 0 : i32
    return %c0_i32, %c0_i32_0 : i32, i32
  }
  func.func @transform_5(%arg0: i32) -> (i32, i32) {
    %c0_i32 = arith.constant 0 : i32
    %c0_i32_0 = arith.constant 0 : i32
    %c0_i32_1 = arith.constant 0 : i32
    return %c0_i32, %c0_i32_0 : i32, i32
  }
  func.func @transform_6(%arg0: i32) -> (i32, i32) {
    %c0_i32 = arith.constant 0 : i32
    %c0_i32_0 = arith.constant 0 : i32
    %c0_i32_1 = arith.constant 0 : i32
    return %c0_i32, %c0_i32_0 : i32, i32
  }
  func.func @transform_7(%arg0: i32) -> (i32, i32) {
    %c0_i32 = arith.constant 0 : i32
    %c0_i32_0 = arith.constant 0 : i32
    %c0_i32_1 = arith.constant 0 : i32
    return %c0_i32, %c0_i32_0 : i32, i32
  }
  func.func @transform_8(%arg0: i32) -> (i32, i32) {
    %c0_i32 = arith.constant 0 : i32
    %c0_i32_0 = arith.constant 0 : i32
    %c0_i32_1 = arith.constant 0 : i32
    return %c0_i32, %c0_i32_0 : i32, i32
  }
  func.func @transform_9(%arg0: i32) -> (i32, i32) {
    %c0_i32 = arith.constant 0 : i32
    %c0_i32_0 = arith.constant 0 : i32
    return %arg0, %c0_i32 : i32, i32
  }
  func.func @transform_10(%arg0: i32) -> (i32, i32) {
    %c0_i32 = arith.constant 0 : i32
    %c0_i32_0 = arith.constant 0 : i32
    return %arg0, %c0_i32 : i32, i32
  }
}

module attributes {stable_mosaic.version = 11 : i64} {
  func.func @_deepmil_kernel(%arg0: i32, %arg1: memref<8x16x32xf32, #tpu.memory_space<vmem>>, %arg2: memref<8x1x16xf32, #tpu.memory_space<vmem>>, %arg3: memref<32x128xf32, #tpu.memory_space<vmem>>, %arg4: memref<1x128xf32, #tpu.memory_space<vmem>>, %arg5: memref<1x128xf32, #tpu.memory_space<vmem>>, %arg6: memref<1x1xf32, #tpu.memory_space<vmem>>, %arg7: memref<1x128xf32, #tpu.memory_space<vmem>>, %arg8: memref<128x1xf32, #tpu.memory_space<vmem>>, %arg9: memref<1x1xf32, #tpu.memory_space<vmem>>, %arg10: memref<8x1xf32, #tpu.memory_space<vmem>>, %arg11: memref<8x16xf32, #tpu.memory_space<vmem>>) attributes {dimension_semantics = [#tpu.dimension_semantics<parallel>], iteration_bounds = array<i64: 2>, scalar_prefetch = 0 : i64, scratch_operands = 0 : i64, tpu.core_type = #tpu.core_type<tc>, window_params = [{transform_indices = @transform_0, window_bounds = array<i64: 8, 16, 32>}, {transform_indices = @transform_1, window_bounds = array<i64: 8, 1, 16>}, {pipeline_mode = #tpu.pipeline_mode<synchronous>, transform_indices = @transform_2, window_bounds = array<i64: 32, 128>}, {pipeline_mode = #tpu.pipeline_mode<synchronous>, transform_indices = @transform_3, window_bounds = array<i64: 1, 128>}, {pipeline_mode = #tpu.pipeline_mode<synchronous>, transform_indices = @transform_4, window_bounds = array<i64: 1, 128>}, {pipeline_mode = #tpu.pipeline_mode<synchronous>, transform_indices = @transform_5, window_bounds = array<i64: 1, 1>}, {pipeline_mode = #tpu.pipeline_mode<synchronous>, transform_indices = @transform_6, window_bounds = array<i64: 1, 128>}, {pipeline_mode = #tpu.pipeline_mode<synchronous>, transform_indices = @transform_7, window_bounds = array<i64: 128, 1>}, {pipeline_mode = #tpu.pipeline_mode<synchronous>, transform_indices = @transform_8, window_bounds = array<i64: 1, 1>}, {transform_indices = @transform_9, window_bounds = array<i64: 8, 1>}, {transform_indices = @transform_10, window_bounds = array<i64: 8, 16>}]} {
    %c0 = arith.constant 0 : index
    %c0_0 = arith.constant 0 : index
    %c0_1 = arith.constant 0 : index
    %0 = vector.load %arg1[%c0, %c0_0, %c0_1] : memref<8x16x32xf32, #tpu.memory_space<vmem>>, vector<8x16x32xf32>
    %1 = vector.shape_cast %0 : vector<8x16x32xf32> to vector<128x32xf32>
    %c0_2 = arith.constant 0 : index
    %c0_3 = arith.constant 0 : index
    %2 = vector.load %arg3[%c0_2, %c0_3] : memref<32x128xf32, #tpu.memory_space<vmem>>, vector<32x128xf32>
    %cst = arith.constant dense<0.000000e+00> : vector<128x128xf32>
    %3 = tpu.matmul %1, %2, %cst {dimension_numbers = #tpu.dot_dimension_numbers<[1], [0], [0], [1], [0, 0, 1, 1], [], []>} : vector<128x32xf32>, vector<32x128xf32>, vector<128x128xf32> -> vector<128x128xf32>
    %c0_4 = arith.constant 0 : index
    %c0_5 = arith.constant 0 : index
    %4 = vector.load %arg4[%c0_4, %c0_5] : memref<1x128xf32, #tpu.memory_space<vmem>>, vector<1x128xf32>
    %5 = vector.broadcast %4 : vector<1x128xf32> to vector<128x128xf32>
    %6 = arith.addf %3, %5 : vector<128x128xf32>
    %7 = vector.shape_cast %6 : vector<128x128xf32> to vector<8x16x128xf32>
    %c0_6 = arith.constant 0 : index
    %c0_7 = arith.constant 0 : index
    %8 = vector.load %arg5[%c0_6, %c0_7] : memref<1x128xf32, #tpu.memory_space<vmem>>, vector<1x128xf32>
    %9 = vector.shape_cast %8 : vector<1x128xf32> to vector<1x1x128xf32>
    %10 = vector.shape_cast %9 : vector<1x1x128xf32> to vector<1x1x128xf32>
    %11 = vector.broadcast %10 : vector<1x1x128xf32> to vector<8x1x128xf32>
    "tpu.trace_start"() <{level = 10 : i32, message = "bqd,bnd->bqn"}> : () -> ()
    %cst_8 = arith.constant dense<0.000000e+00> : vector<8x1x16xf32>
    %12 = tpu.matmul %11, %7, %cst_8 {dimension_numbers = #tpu.dot_dimension_numbers<[2], [2], [1], [1], [0, 0, 0, 1, 1, 1], [0], [0]>} : vector<8x1x128xf32>, vector<8x16x128xf32>, vector<8x1x16xf32> -> vector<8x1x16xf32>
    "tpu.trace_stop"() : () -> ()
    %c0_9 = arith.constant 0 : index
    %c0_10 = arith.constant 0 : index
    %13 = vector.load %arg6[%c0_9, %c0_10] : memref<1x1xf32, #tpu.memory_space<vmem>>, vector<1x1xf32>
    %14 = vector.shape_cast %13 : vector<1x1xf32> to vector<1x1x1xf32>
    %15 = vector.broadcast %14 : vector<1x1x1xf32> to vector<8x1x16xf32>
    %16 = arith.addf %12, %15 : vector<8x1x16xf32>
    %c0_11 = arith.constant 0 : index
    %c0_12 = arith.constant 0 : index
    %c0_13 = arith.constant 0 : index
    %17 = vector.load %arg2[%c0_11, %c0_12, %c0_13] : memref<8x1x16xf32, #tpu.memory_space<vmem>>, vector<8x1x16xf32>
    %cst_14 = arith.constant 5.000000e-01 : f32
    %18 = vector.broadcast %cst_14 : f32 to vector<8x1x16xf32>
    %19 = arith.cmpf ogt, %17, %18 : vector<8x1x16xf32>
    %cst_15 = arith.constant 0xFF800000 : f32
    %20 = vector.broadcast %cst_15 : f32 to vector<8x1x16xf32>
    %21 = arith.select %19, %20, %16 : vector<8x1x16xi1>, vector<8x1x16xf32>
    %cst_16 = arith.constant dense<0xFF800000> : vector<8x1xf32>
    %22 = vector.multi_reduction <maximumf>, %21, %cst_16 [2] : vector<8x1x16xf32> to vector<8x1xf32>
    %23 = vector.shape_cast %22 : vector<8x1xf32> to vector<8x1x1xf32>
    %24 = vector.broadcast %23 : vector<8x1x1xf32> to vector<8x1x16xf32>
    %25 = arith.subf %21, %24 : vector<8x1x16xf32>
    %26 = math.exp %25 : vector<8x1x16xf32>
    %cst_17 = arith.constant dense<0.000000e+00> : vector<8x1xf32>
    %27 = vector.multi_reduction <add>, %26, %cst_17 [2] : vector<8x1x16xf32> to vector<8x1xf32>
    %28 = vector.shape_cast %27 : vector<8x1xf32> to vector<8x1x1xf32>
    %29 = vector.broadcast %28 : vector<8x1x1xf32> to vector<8x1x16xf32>
    %30 = arith.divf %26, %29 : vector<8x1x16xf32>
    %31 = vector.shape_cast %30 : vector<8x1x16xf32> to vector<8x16xf32>
    %c0_18 = arith.constant 0 : index
    %c0_19 = arith.constant 0 : index
    %32 = vector.load %arg11[%c0_18, %c0_19] : memref<8x16xf32, #tpu.memory_space<vmem>>, vector<8x16xf32>
    tpu.vector_store %arg11[%c0_18, %c0_19], %31 {strides = array<i32>} : memref<8x16xf32, #tpu.memory_space<vmem>>, vector<8x16xf32>,
    "tpu.trace_start"() <{level = 10 : i32, message = "bqn,bnd->bqd"}> : () -> ()
    %cst_20 = arith.constant dense<0.000000e+00> : vector<8x1x128xf32>
    %33 = tpu.matmul %30, %7, %cst_20 {dimension_numbers = #tpu.dot_dimension_numbers<[2], [1], [1], [2], [0, 0, 0, 1, 1, 2], [0], [0]>} : vector<8x1x16xf32>, vector<8x16x128xf32>, vector<8x1x128xf32> -> vector<8x1x128xf32>
    "tpu.trace_stop"() : () -> ()
    %34 = vector.shape_cast %33 : vector<8x1x128xf32> to vector<8x128xf32>
    %c0_21 = arith.constant 0 : index
    %c0_22 = arith.constant 0 : index
    %35 = vector.load %arg7[%c0_21, %c0_22] : memref<1x128xf32, #tpu.memory_space<vmem>>, vector<1x128xf32>
    %36 = vector.broadcast %35 : vector<1x128xf32> to vector<8x128xf32>
    %37 = arith.addf %34, %36 : vector<8x128xf32>
    %c0_23 = arith.constant 0 : index
    %c0_24 = arith.constant 0 : index
    %38 = vector.load %arg8[%c0_23, %c0_24] : memref<128x1xf32, #tpu.memory_space<vmem>>, vector<128x1xf32>
    %cst_25 = arith.constant dense<0.000000e+00> : vector<8x1xf32>
    %39 = tpu.matmul %37, %38, %cst_25 {dimension_numbers = #tpu.dot_dimension_numbers<[1], [0], [0], [1], [0, 0, 1, 1], [], []>} : vector<8x128xf32>, vector<128x1xf32>, vector<8x1xf32> -> vector<8x1xf32>
    %c0_26 = arith.constant 0 : index
    %c0_27 = arith.constant 0 : index
    %40 = vector.load %arg9[%c0_26, %c0_27] : memref<1x1xf32, #tpu.memory_space<vmem>>, vector<1x1xf32>
    %41 = vector.broadcast %40 : vector<1x1xf32> to vector<8x1xf32>
    %42 = arith.addf %39, %41 : vector<8x1xf32>
    %c0_28 = arith.constant 0 : index
    %c0_29 = arith.constant 0 : index
    %43 = vector.load %arg10[%c0_28, %c0_29] : memref<8x1xf32, #tpu.memory_space<vmem>>, vector<8x1xf32>
    tpu.vector_store %arg10[%c0_28, %c0_29], %42 {strides = array<i32>} : memref<8x1xf32, #tpu.memory_space<vmem>>, vector<8x1xf32>,
    return
  }
  func.func @transform_0(%arg0: i32) -> (i32, i32, i32) {
    %c0_i32 = arith.constant 0 : i32
    %c0_i32_0 = arith.constant 0 : i32
    %c0_i32_1 = arith.constant 0 : i32
    return %arg0, %c0_i32, %c0_i32_0 : i32, i32, i32
  }
  func.func @transform_1(%arg0: i32) -> (i32, i32, i32) {
    %c0_i32 = arith.constant 0 : i32
    %c0_i32_0 = arith.constant 0 : i32
    %c0_i32_1 = arith.constant 0 : i32
    return %arg0, %c0_i32, %c0_i32_0 : i32, i32, i32
  }
  func.func @transform_2(%arg0: i32) -> (i32, i32) {
    %c0_i32 = arith.constant 0 : i32
    %c0_i32_0 = arith.constant 0 : i32
    %c0_i32_1 = arith.constant 0 : i32
    return %c0_i32, %c0_i32_0 : i32, i32
  }
  func.func @transform_3(%arg0: i32) -> (i32, i32) {
    %c0_i32 = arith.constant 0 : i32
    %c0_i32_0 = arith.constant 0 : i32
    %c0_i32_1 = arith.constant 0 : i32
    return %c0_i32, %c0_i32_0 : i32, i32
  }
  func.func @transform_4(%arg0: i32) -> (i32, i32) {
    %c0_i32 = arith.constant 0 : i32
    %c0_i32_0 = arith.constant 0 : i32
    %c0_i32_1 = arith.constant 0 : i32
    return %c0_i32, %c0_i32_0 : i32, i32
  }
  func.func @transform_5(%arg0: i32) -> (i32, i32) {
    %c0_i32 = arith.constant 0 : i32
    %c0_i32_0 = arith.constant 0 : i32
    %c0_i32_1 = arith.constant 0 : i32
    return %c0_i32, %c0_i32_0 : i32, i32
  }
  func.func @transform_6(%arg0: i32) -> (i32, i32) {
    %c0_i32 = arith.constant 0 : i32
    %c0_i32_0 = arith.constant 0 : i32
    %c0_i32_1 = arith.constant 0 : i32
    return %c0_i32, %c0_i32_0 : i32, i32
  }
  func.func @transform_7(%arg0: i32) -> (i32, i32) {
    %c0_i32 = arith.constant 0 : i32
    %c0_i32_0 = arith.constant 0 : i32
    %c0_i32_1 = arith.constant 0 : i32
    return %c0_i32, %c0_i32_0 : i32, i32
  }
  func.func @transform_8(%arg0: i32) -> (i32, i32) {
    %c0_i32 = arith.constant 0 : i32
    %c0_i32_0 = arith.constant 0 : i32
    %c0_i32_1 = arith.constant 0 : i32
    return %c0_i32, %c0_i32_0 : i32, i32
  }
  func.func @transform_9(%arg0: i32) -> (i32, i32) {
    %c0_i32 = arith.constant 0 : i32
    %c0_i32_0 = arith.constant 0 : i32
    return %arg0, %c0_i32 : i32, i32
  }
  func.func @transform_10(%arg0: i32) -> (i32, i32) {
    %c0_i32 = arith.constant 0 : i32
    %c0_i32_0 = arith.constant 0 : i32
    return %arg0, %c0_i32 : i32, i32
  }
}

</mosaic_0001>

<llo_original>
// kernel: tpu_custom_call.1
$region0: #{tpu_custom_call.1}
  #allocation0 [shape = 'u32[]', space=smem, size = 0x4, offset = 0x4, fixed_abs, tag = 'smem constant byte address 0x4 - core index']
  #allocation1 [shape = 'u32[72,128]{1,0:T(1,128)}', space=vmem, size = 0x9000, scoped, tag = 'internal scratch']
  #allocation2 [shape = 'f32[1,1]{1,0:T(1,128)S(1)}', space=vmem, size = 0x200, scoped, tag = 'scoped memory for tpu_custom_call.1']
  #allocation3 [shape = 'f32[1,1]{1,0:T(1,128)S(1)}', space=vmem, size = 0x200, scoped, tag = 'scoped memory for tpu_custom_call.1']
  %s0 = inlined_call_operand.hbm [shape: f32[16,16,32], index: 0, kind: input, shape index: {}]
  %s1 = inlined_call_operand.vmem [shape: f32[16,1,16], index: 1, kind: input, shape index: {}]
  %s2 = inlined_call_operand.vmem [shape: f32[32,128], index: 2, kind: input, shape index: {}]
  %s3 = inlined_call_operand.vmem [shape: f32[1,128], index: 3, kind: input, shape index: {}]
  %s4 = inlined_call_operand.vmem [shape: f32[1,128], index: 4, kind: input, shape index: {}]
  %s5 = inlined_call_operand.<no memory space> [shape: f32[1,1], index: 5, kind: input, shape index: {}]
  %s6 = inlined_call_operand.vmem [shape: f32[1,128], index: 6, kind: input, shape index: {}]
  %s7 = inlined_call_operand.vmem [shape: f32[128,1], index: 7, kind: input, shape index: {}]
  %s8 = inlined_call_operand.<no memory space> [shape: f32[1,1], index: 8, kind: input, shape index: {}]
  %s9 = inlined_call_operand.vmem [shape: f32[16,1], index: 9, kind: output, shape index: {0}]
  %s10 = inlined_call_operand.hbm [shape: f32[16,16], index: 10, kind: output, shape index: {1}]
  %11 = xla_tuple %s9, %s10
  %s12 = sld [smem:[#allocation0]]
  $region81: #{tpu_custom_call.1} parent=0
    _
  %s14 = ssub.s32 1, %s12
  %s15 = scalar_select 0, %s14, %s12
  %v16 = vstv %s5
  %17 = vst [vmem:[#allocation2] sm:$0x1] %v16
  %v18 = vstv %s8
  %19 = vst [vmem:[#allocation3] sm:$0x1] %v18
  $region1: #{tpu_custom_call.1} parent=0
    #allocation4 [shape = 'u8[131072]{0}', space=vmem, size = 0x20000, scoped, tag = 'input window, operand 0']
    #allocation5 [shape = 's32[2]{0}', space=sflag, size = 0x8, scoped, tag = 'scoped memory for tpu_custom_call.1']
    #allocation6 [shape = 's32[2]{0}', space=sflag, size = 0x8, scoped, tag = 'scoped memory for tpu_custom_call.1']
    #allocation7 [shape = 'u8[8192]{0}', space=vmem, size = 0x2000, scoped, tag = 'output window, operand 1']
    %20 = vsyncpa [#allocation5], 0
    %s21 = scalar_lea.sflag [#allocation5], 1
    %22 = vsyncpa %s21, 0
    %23 = vsyncpa [#allocation6], 0
    %s24 = scalar_lea.sflag [#allocation6], 1
    %25 = vsyncpa %s24, 0
    loop: start=0, step=1, limit=4
    $region2: #{tpu_custom_call.1} parent=1 // loop_pre_header
      _
    $region3: #{tpu_custom_call.1} parent=1 // loop_header
      %s27 = sphi 0, %s31
      %p28 = scmp.ge.s32.totalorder %s27, 4
      %s37 = sphi 0, %s39
      %s40 = sphi 0, %s37
      %s41 = sphi 0, %s40
      %s57 = sphi 0, %s41
      %s63 = sphi 0, %s65
      %s66 = sphi 0, %s63
      %s67 = sphi 0, %s66
      %s83 = sphi 0, %s67
      %s87 = sphi 0, %s87
      %s89 = sphi 0, %s87
      %s90 = sphi 0, %s89
      %s104 = sphi 0, %s90
      %s108 = sphi 0, %s108
      %s110 = sphi 0, %s108
      %s111 = sphi 0, %s110
      %s125 = sphi 0, %s111
      %s129 = sphi 0, %s129
      %s131 = sphi 0, %s129
      %s132 = sphi 0, %s131
      %s146 = sphi 0, %s132
      %s150 = sphi 0, %s150
      %s152 = sphi 0, %s150
      %s153 = sphi 0, %s152
      %s167 = sphi 0, %s153
      %s171 = sphi 0, %s171
      %s173 = sphi 0, %s171
      %s174 = sphi 0, %s173
      %s188 = sphi 0, %s174
      %s192 = sphi 0, %s192
      %s194 = sphi 0, %s192
      %s195 = sphi 0, %s194
      %s209 = sphi 0, %s195
      %s213 = sphi 0, %s213
      %s215 = sphi 0, %s213
      %s216 = sphi 0, %s215
      %s230 = sphi 0, %s216
      %s236 = sphi 0, %s238
      %s239 = sphi 0, %s236
      %s240 = sphi 0, %s239
      %s256 = sphi 0, %s240
      %s262 = sphi 0, %s264
      %s265 = sphi 0, %s262
      %s266 = sphi 0, %s265
      %s282 = sphi 0, %s266
    $region4: #{tpu_custom_call.1} parent=1 // loop_header_branch
      %30 = sbr.rel (%p28) target = $region8
    $region5: #{tpu_custom_call.1} parent=1 // loop_body
      %s32 = ssub.s32 %s27, 1
      %s33 = ssub.s32 %s27, 2
      %s34 = sadd.s32 %s27, 1
      %s35 = ssub.s32 %s27, %s34
      %p36 = scmp.eq.s32.totalorder %s35, 0
      %s38 = sadd.s32 %s37, 1
      %s39 = scalar_select %p36, %s37, %s38
      %p42 = pneg %p36
      %p43 = scmp.eq.s32.totalorder %s27, 1
      %p44 = por %p42, %p43
      %p45 = scmp.ne.s32.totalorder %s37, %s40
      %p46 = scmp.eq.s32.totalorder %s27, 0
      %p47 = por %p45, %p46
      %p48 = scmp.ne.s32.totalorder %s37, %s40
      %p49 = scmp.eq.s32.totalorder %s32, 1
      %p50 = por %p48, %p49
      %p51 = scmp.ne.s32.totalorder %s40, %s41
      %p52 = scmp.eq.s32.totalorder %s32, 0
      %p53 = por %p51, %p52
      %p54 = scmp.ne.s32.totalorder %s40, %s41
      %p55 = scmp.eq.s32.totalorder %s33, 1
      %p56 = por %p54, %p55
      %p58 = scmp.ne.s32.totalorder %s41, %s57
      %p59 = scmp.eq.s32.totalorder %s33, 0
      %p60 = por %p58, %p59
      %s61 = ssub.s32 %s27, %s34
      %p62 = scmp.eq.s32.totalorder %s61, 0
      %s64 = sadd.s32 %s63, 1
      %s65 = scalar_select %p62, %s63, %s64
      %p68 = pneg %p62
      %p69 = scmp.eq.s32.totalorder %s27, 1
      %p70 = por %p68, %p69
      %p71 = scmp.ne.s32.totalorder %s63, %s66
      %p72 = scmp.eq.s32.totalorder %s27, 0
      %p73 = por %p71, %p72
      %p74 = scmp.ne.s32.totalorder %s63, %s66
      %p75 = scmp.eq.s32.totalorder %s32, 1
      %p76 = por %p74, %p75
      %p77 = scmp.ne.s32.totalorder %s66, %s67
      %p78 = scmp.eq.s32.totalorder %s32, 0
      %p79 = por %p77, %p78
      %p80 = scmp.ne.s32.totalorder %s66, %s67
      %p81 = scmp.eq.s32.totalorder %s33, 1
      %p82 = por %p80, %p81
      %p84 = scmp.ne.s32.totalorder %s67, %s83
      %p85 = scmp.eq.s32.totalorder %s33, 0
      %p86 = por %p84, %p85
      %s88 = sadd.s32 %s87, 1
      %p91 = scmp.eq.s32.totalorder %s27, 1
      %p92 = scmp.ne.s32.totalorder %s87, %s89
      %p93 = scmp.eq.s32.totalorder %s27, 0
      %p94 = por %p92, %p93
      %p95 = scmp.ne.s32.totalorder %s87, %s89
      %p96 = scmp.eq.s32.totalorder %s32, 1
      %p97 = por %p95, %p96
      %p98 = scmp.ne.s32.totalorder %s89, %s90
      %p99 = scmp.eq.s32.totalorder %s32, 0
      %p100 = por %p98, %p99
      %p101 = scmp.ne.s32.totalorder %s89, %s90
      %p102 = scmp.eq.s32.totalorder %s33, 1
      %p103 = por %p101, %p102
      %p105 = scmp.ne.s32.totalorder %s90, %s104
      %p106 = scmp.eq.s32.totalorder %s33, 0
      %p107 = por %p105, %p106
      %s109 = sadd.s32 %s108, 1
      %p112 = scmp.eq.s32.totalorder %s27, 1
      %p113 = scmp.ne.s32.totalorder %s108, %s110
      %p114 = scmp.eq.s32.totalorder %s27, 0
      %p115 = por %p113, %p114
      %p116 = scmp.ne.s32.totalorder %s108, %s110
      %p117 = scmp.eq.s32.totalorder %s32, 1
      %p118 = por %p116, %p117
      %p119 = scmp.ne.s32.totalorder %s110, %s111
      %p120 = scmp.eq.s32.totalorder %s32, 0
      %p121 = por %p119, %p120
      %p122 = scmp.ne.s32.totalorder %s110, %s111
      %p123 = scmp.eq.s32.totalorder %s33, 1
      %p124 = por %p122, %p123
      %p126 = scmp.ne.s32.totalorder %s111, %s125
      %p127 = scmp.eq.s32.totalorder %s33, 0
      %p128 = por %p126, %p127
      %s130 = sadd.s32 %s129, 1
      %p133 = scmp.eq.s32.totalorder %s27, 1
      %p134 = scmp.ne.s32.totalorder %s129, %s131
      %p135 = scmp.eq.s32.totalorder %s27, 0
      %p136 = por %p134, %p135
      %p137 = scmp.ne.s32.totalorder %s129, %s131
      %p138 = scmp.eq.s32.totalorder %s32, 1
      %p139 = por %p137, %p138
      %p140 = scmp.ne.s32.totalorder %s131, %s132
      %p141 = scmp.eq.s32.totalorder %s32, 0
      %p142 = por %p140, %p141
      %p143 = scmp.ne.s32.totalorder %s131, %s132
      %p144 = scmp.eq.s32.totalorder %s33, 1
      %p145 = por %p143, %p144
      %p147 = scmp.ne.s32.totalorder %s132, %s146
      %p148 = scmp.eq.s32.totalorder %s33, 0
      %p149 = por %p147, %p148
      %s151 = sadd.s32 %s150, 1
      %p154 = scmp.eq.s32.totalorder %s27, 1
      %p155 = scmp.ne.s32.totalorder %s150, %s152
      %p156 = scmp.eq.s32.totalorder %s27, 0
      %p157 = por %p155, %p156
      %p158 = scmp.ne.s32.totalorder %s150, %s152
      %p159 = scmp.eq.s32.totalorder %s32, 1
      %p160 = por %p158, %p159
      %p161 = scmp.ne.s32.totalorder %s152, %s153
      %p162 = scmp.eq.s32.totalorder %s32, 0
      %p163 = por %p161, %p162
      %p164 = scmp.ne.s32.totalorder %s152, %s153
      %p165 = scmp.eq.s32.totalorder %s33, 1
      %p166 = por %p164, %p165
      %p168 = scmp.ne.s32.totalorder %s153, %s167
      %p169 = scmp.eq.s32.totalorder %s33, 0
      %p170 = por %p168, %p169
      %s172 = sadd.s32 %s171, 1
      %p175 = scmp.eq.s32.totalorder %s27, 1
      %p176 = scmp.ne.s32.totalorder %s171, %s173
      %p177 = scmp.eq.s32.totalorder %s27, 0
      %p178 = por %p176, %p177
      %p179 = scmp.ne.s32.totalorder %s171, %s173
      %p180 = scmp.eq.s32.totalorder %s32, 1
      %p181 = por %p179, %p180
      %p182 = scmp.ne.s32.totalorder %s173, %s174
      %p183 = scmp.eq.s32.totalorder %s32, 0
      %p184 = por %p182, %p183
      %p185 = scmp.ne.s32.totalorder %s173, %s174
      %p186 = scmp.eq.s32.totalorder %s33, 1
      %p187 = por %p185, %p186
      %p189 = scmp.ne.s32.totalorder %s174, %s188
      %p190 = scmp.eq.s32.totalorder %s33, 0
      %p191 = por %p189, %p190
      %s193 = sadd.s32 %s192, 1
      %p196 = scmp.eq.s32.totalorder %s27, 1
      %p197 = scmp.ne.s32.totalorder %s192, %s194
      %p198 = scmp.eq.s32.totalorder %s27, 0
      %p199 = por %p197, %p198
      %p200 = scmp.ne.s32.totalorder %s192, %s194
      %p201 = scmp.eq.s32.totalorder %s32, 1
      %p202 = por %p200, %p201
      %p203 = scmp.ne.s32.totalorder %s194, %s195
      %p204 = scmp.eq.s32.totalorder %s32, 0
      %p205 = por %p203, %p204
      %p206 = scmp.ne.s32.totalorder %s194, %s195
      %p207 = scmp.eq.s32.totalorder %s33, 1
      %p208 = por %p206, %p207
      %p210 = scmp.ne.s32.totalorder %s195, %s209
      %p211 = scmp.eq.s32.totalorder %s33, 0
      %p212 = por %p210, %p211
      %s214 = sadd.s32 %s213, 1
      %p217 = scmp.eq.s32.totalorder %s27, 1
      %p218 = scmp.ne.s32.totalorder %s213, %s215
      %p219 = scmp.eq.s32.totalorder %s27, 0
      %p220 = por %p218, %p219
      %p221 = scmp.ne.s32.totalorder %s213, %s215
      %p222 = scmp.eq.s32.totalorder %s32, 1
      %p223 = por %p221, %p222
      %p224 = scmp.ne.s32.totalorder %s215, %s216
      %p225 = scmp.eq.s32.totalorder %s32, 0
      %p226 = por %p224, %p225
      %p227 = scmp.ne.s32.totalorder %s215, %s216
      %p228 = scmp.eq.s32.totalorder %s33, 1
      %p229 = por %p227, %p228
      %p231 = scmp.ne.s32.totalorder %s216, %s230
      %p232 = scmp.eq.s32.totalorder %s33, 0
      %p233 = por %p231, %p232
      %s234 = ssub.s32 %s27, %s34
      %p235 = scmp.eq.s32.totalorder %s234, 0
      %s237 = sadd.s32 %s236, 1
      %s238 = scalar_select %p235, %s236, %s237
      %p241 = pneg %p235
      %p242 = scmp.eq.s32.totalorder %s27, 1
      %p243 = por %p241, %p242
      %p244 = scmp.ne.s32.totalorder %s236, %s239
      %p245 = scmp.eq.s32.totalorder %s27, 0
      %p246 = por %p244, %p245
      %p247 = scmp.ne.s32.totalorder %s236, %s239
      %p248 = scmp.eq.s32.totalorder %s32, 1
      %p249 = por %p247, %p248
      %p250 = scmp.ne.s32.totalorder %s239, %s240
      %p251 = scmp.eq.s32.totalorder %s32, 0
      %p252 = por %p250, %p251
      %p253 = scmp.ne.s32.totalorder %s239, %s240
      %p254 = scmp.eq.s32.totalorder %s33, 1
      %p255 = por %p253, %p254
      %p257 = scmp.ne.s32.totalorder %s240, %s256
      %p258 = scmp.eq.s32.totalorder %s33, 0
      %p259 = por %p257, %p258
      %s260 = ssub.s32 %s27, %s34
      %p261 = scmp.eq.s32.totalorder %s260, 0
      %s263 = sadd.s32 %s262, 1
      %s264 = scalar_select %p261, %s262, %s263
      %p267 = pneg %p261
      %p268 = scmp.eq.s32.totalorder %s27, 1
      %p269 = por %p267, %p268
      %p270 = scmp.ne.s32.totalorder %s262, %s265
      %p271 = scmp.eq.s32.totalorder %s27, 0
      %p272 = por %p270, %p271
      %p273 = scmp.ne.s32.totalorder %s262, %s265
      %p274 = scmp.eq.s32.totalorder %s32, 1
      %p275 = por %p273, %p274
      %p276 = scmp.ne.s32.totalorder %s265, %s266
      %p277 = scmp.eq.s32.totalorder %s32, 0
      %p278 = por %p276, %p277
      %p279 = scmp.ne.s32.totalorder %s265, %s266
      %p280 = scmp.eq.s32.totalorder %s33, 1
      %p281 = por %p279, %p280
      %p283 = scmp.ne.s32.totalorder %s266, %s282
      %p284 = scmp.eq.s32.totalorder %s33, 0
      %p285 = por %p283, %p284
      %p286 = scmp.le.s32.totalorder 1, %s27
      %p287 = scmp.lt.s32.totalorder %s27, 3
      %p288 = pnand %p286, %p287
      %p289 = pneg %p288
      // Predicated region
      $region9: #{tpu_custom_call.1} parent=5 // pred_check
        _
      $region10: #{tpu_custom_call.1} parent=5 // pred_check_branch
        %291 = sbr.rel (%p288) target = $region12
      $region11: #{tpu_custom_call.1} parent=5 // pred_region
        %s292 = ssub.s32 %s27, 1
        // Predicated region
        $region13: #{tpu_custom_call.1} parent=11 // pred_check
          %p293 = pneg %p100
        $region14: #{tpu_custom_call.1} parent=11 // pred_check_branch
          %295 = sbr.rel (%p293) target = $region16
        $region15: #{tpu_custom_call.1} parent=11 // pred_region
          _
        $region16: #{tpu_custom_call.1} parent=11 // pred_fallthru
          _
        // Predicated region
        $region17: #{tpu_custom_call.1} parent=11 // pred_check
          %p296 = pneg %p121
        $region18: #{tpu_custom_call.1} parent=11 // pred_check_branch
          %298 = sbr.rel (%p296) target = $region20
        $region19: #{tpu_custom_call.1} parent=11 // pred_region
          _
        $region20: #{tpu_custom_call.1} parent=11 // pred_fallthru
          _
        // Predicated region
        $region21: #{tpu_custom_call.1} parent=11 // pred_check
          %p299 = pneg %p142
        $region22: #{tpu_custom_call.1} parent=11 // pred_check_branch
          %301 = sbr.rel (%p299) target = $region24
        $region23: #{tpu_custom_call.1} parent=11 // pred_region
          _
        $region24: #{tpu_custom_call.1} parent=11 // pred_fallthru
          _
        // Predicated region
        $region25: #{tpu_custom_call.1} parent=11 // pred_check
          %p302 = pneg %p163
        $region26: #{tpu_custom_call.1} parent=11 // pred_check_branch
          %304 = sbr.rel (%p302) target = $region28
        $region27: #{tpu_custom_call.1} parent=11 // pred_region
          _
        $region28: #{tpu_custom_call.1} parent=11 // pred_fallthru
          _
        // Predicated region
        $region29: #{tpu_custom_call.1} parent=11 // pred_check
          %p305 = pneg %p184
        $region30: #{tpu_custom_call.1} parent=11 // pred_check_branch
          %307 = sbr.rel (%p305) target = $region32
        $region31: #{tpu_custom_call.1} parent=11 // pred_region
          _
        $region32: #{tpu_custom_call.1} parent=11 // pred_fallthru
          _
        // Predicated region
        $region33: #{tpu_custom_call.1} parent=11 // pred_check
          %p308 = pneg %p205
        $region34: #{tpu_custom_call.1} parent=11 // pred_check_branch
          %310 = sbr.rel (%p308) target = $region36
        $region35: #{tpu_custom_call.1} parent=11 // pred_region
          _
        $region36: #{tpu_custom_call.1} parent=11 // pred_fallthru
          _
        // Predicated region
        $region37: #{tpu_custom_call.1} parent=11 // pred_check
          %p311 = pneg %p226
        $region38: #{tpu_custom_call.1} parent=11 // pred_check_branch
          %313 = sbr.rel (%p311) target = $region40
        $region39: #{tpu_custom_call.1} parent=11 // pred_region
          _
        $region40: #{tpu_custom_call.1} parent=11 // pred_fallthru
          _
      $region12: #{tpu_custom_call.1} parent=5 // pred_fallthru
        _
      %p314 = scmp.lt.s32.totalorder %s27, 2
      // Predicated region
      $region41: #{tpu_custom_call.1} parent=5 // pred_check
        %p315 = pneg %p314
      $region42: #{tpu_custom_call.1} parent=5 // pred_check_branch
        %317 = sbr.rel (%p315) target = $region44
      $region43: #{tpu_custom_call.1} parent=5 // pred_region
        // Predicated region
        $region45: #{tpu_custom_call.1} parent=43 // pred_check
          %p318 = pneg %p47
        $region46: #{tpu_custom_call.1} parent=43 // pred_check_branch
          %320 = sbr.rel (%p318) target = $region48
        $region47: #{tpu_custom_call.1} parent=43 // pred_region
          %s321 = sand.u32 %s37, 1
          %s322 = scalar_lea.sflag [#allocation5], %s321
          %s323 = sand.u32 %s37, 1
          %s324 = smul.addr %s323, 128
          %s325 = scalar_lea.vmem [#allocation4], %s324
          %s326 = smul.u32 8, %s27
          %328 = vsyncadd %s322, 0
          %s329 = smul.addr %s326, 2
          %s330 = smul.addr %s329, 8
          %s331 = scalar_lea.hbm %s0, %s330
          %s332 = sshll.u32 %s331, 4
          %s333 = int_to_ptr.hbm [resolvable:$true] %s332
          %s334 = sshll.u32 %s325, 4
          %s335 = int_to_ptr.vmem [resolvable:$true] %s334
          %340 = dma.hbm_to_vmem [thread:$0]  %s333, 2048, %s335, %s322, 128, 128, 8
        $region48: #{tpu_custom_call.1} parent=43 // pred_fallthru
          _
        // Predicated region
        $region49: #{tpu_custom_call.1} parent=43 // pred_check
          %p341 = pneg %p73
        $region50: #{tpu_custom_call.1} parent=43 // pred_check_branch
          %343 = sbr.rel (%p341) target = $region52
        $region51: #{tpu_custom_call.1} parent=43 // pred_region
          %s344 = smul.u32 8, %s27
          %p345 = scmp.lt.s32.totalorder %s344, 15
          %s346 = scalar_select %p345, %s344, 15
          %s347 = scalar_lea.vmem %s1, %s346
          %s348 = smul.u32 8, %s27
        $region52: #{tpu_custom_call.1} parent=43 // pred_fallthru
          _
      $region44: #{tpu_custom_call.1} parent=5 // pred_fallthru
        _
      %p349 = scmp.le.s32.totalorder 1, %s27
      %p350 = scmp.lt.s32.totalorder %s27, 3
      %p351 = pnand %p349, %p350
      %p352 = pneg %p351
      // Predicated region
      $region53: #{tpu_custom_call.1} parent=5 // pred_check
        _
      $region54: #{tpu_custom_call.1} parent=5 // pred_check_branch
        %354 = sbr.rel (%p351) target = $region56
      $region55: #{tpu_custom_call.1} parent=5 // pred_region
        %s355 = ssub.s32 %s27, 1
        %s356 = sand.u32 %s40, 1
        %s357 = scalar_lea.sflag [#allocation5], %s356
        %s358 = sand.u32 %s40, 1
        %s359 = smul.addr %s358, 128
        %s360 = scalar_lea.vmem [#allocation4], %s359
        // Predicated region
        $region57: #{tpu_custom_call.1} parent=55 // pred_check
          %p361 = pneg %p53
        $region58: #{tpu_custom_call.1} parent=55 // pred_check_branch
          %363 = sbr.rel (%p361) target = $region60
        $region59: #{tpu_custom_call.1} parent=55 // pred_region
          %365 = dma.done %s357, 2048
        $region60: #{tpu_custom_call.1} parent=55 // pred_fallthru
          _
        %s366 = sand.u32 %s40, 1
        %s367 = scalar_lea.sflag [#allocation5], %s366
        %s368 = sand.u32 %s40, 1
        %s369 = smul.addr %s368, 128
        %s370 = scalar_lea.vmem [#allocation4], %s369
        %p371 = pneg %p53
        %p372 = pneg %p50
        %s373 = smul.u32 8, %s32
        %p374 = scmp.lt.s32.totalorder %s373, 15
        %s375 = scalar_select %p374, %s373, 15
        %s376 = scalar_lea.vmem %s1, %s375
        %p377 = pneg %p79
        %p378 = pneg %p76
        %p379 = pneg %p100
        %p380 = pneg %p97
        %p381 = pneg %p121
        %p382 = pneg %p118
        %p383 = pneg %p142
        %p384 = pneg %p139
        %p385 = pneg %p163
        %p386 = pneg %p160
        %p387 = pneg %p184
        %p388 = pneg %p181
        %p389 = pneg %p205
        %p390 = pneg %p202
        %p391 = pneg %p226
        %p392 = pneg %p223
        %p393 = pneg %p252
        %p394 = pneg %p249
        %p395 = scmp.lt.s32.totalorder %s32, 1
        %s396 = scalar_select %p395, %s32, 1
        %s397 = smul.addr %s396, 8
        %s398 = scalar_lea.vmem %s9, %s397
        %p399 = pneg %p278
        %p400 = pneg %p275
        %s401 = sand.u32 %s265, 1
        %s402 = scalar_lea.sflag [#allocation6], %s401
        %s403 = sand.u32 %s265, 1
        %s404 = smul.addr %s403, 8
        %s405 = scalar_lea.vmem [#allocation7], %s404
        %s406 = smul.u32 8, %s32
        %s407 = smul.u32 8, %s32
        %p408 = scmp.lt.s32.totalorder %s407, 15
        %s409 = scalar_select %p408, %s407, 15
        %s410 = scalar_lea.vmem %s1, %s409
        %s411 = smul.u32 8, %s32
        %p412 = scmp.lt.s32.totalorder %s32, 1
        %s413 = scalar_select %p412, %s32, 1
        %s414 = smul.addr %s413, 8
        %s415 = scalar_lea.vmem %s9, %s414
        %v416 = vld [vmem:[%s360] sm:$0xff]
        %v417 = vld [vmem:[%s360 + $0x8] sm:$0xff]
        %v418 = vld [vmem:[%s360 + $0x10] sm:$0xff]
        %v419 = vld [vmem:[%s360 + $0x18] sm:$0xff]
        %v420 = vld [vmem:[%s360 + $0x20] sm:$0xff]
        %v421 = vld [vmem:[%s360 + $0x28] sm:$0xff]
        %v422 = vld [vmem:[%s360 + $0x30] sm:$0xff]
        %v423 = vld [vmem:[%s360 + $0x38] sm:$0xff]
        %v424 = vld [vmem:[%s360 + $0x40] sm:$0xff]
        %v425 = vld [vmem:[%s360 + $0x48] sm:$0xff]
        %v426 = vld [vmem:[%s360 + $0x50] sm:$0xff]
        %v427 = vld [vmem:[%s360 + $0x58] sm:$0xff]
        %v428 = vld [vmem:[%s360 + $0x60] sm:$0xff]
        %v429 = vld [vmem:[%s360 + $0x68] sm:$0xff]
        %v430 = vld [vmem:[%s360 + $0x70] sm:$0xff]
        %v431 = vld [vmem:[%s360 + $0x78] sm:$0xff]
        %v432 = vld [vmem:[%s2] sm:$0xff]
        %v433 = vld [vmem:[%s2 + $0x8] sm:$0xff]
        %v434 = vld [vmem:[%s2 + $0x10] sm:$0xff]
        %v435 = vld [vmem:[%s2 + $0x18] sm:$0xff]
        %v436 = vld [vmem:[%s3] sm:$0x1]
        %v438 = vperm.slane %v436, 0
        %vm440 = vcmask 261120
        %v442 = vsel %vm440, %v416, 0
        %v445 = vsel %vm440, %v417, 0
        %v448 = vsel %vm440, %v418, 0
        %v451 = vsel %vm440, %v419, 0
        %v454 = vsel %vm440, %v420, 0
        %v457 = vsel %vm440, %v421, 0
        %v460 = vsel %vm440, %v422, 0
        %v463 = vsel %vm440, %v423, 0
        %v466 = vsel %vm440, %v424, 0
        %v469 = vsel %vm440, %v425, 0
        %v472 = vsel %vm440, %v426, 0
        %v475 = vsel %vm440, %v427, 0
        %v478 = vsel %vm440, %v428, 0
        %v481 = vsel %vm440, %v429, 0
        %v484 = vsel %vm440, %v430, 0
        %v487 = vsel %vm440, %v431, 0
        %489 = vmatpush.msra.mxu0 0.0
        %490 = vmatpush.msra.mxu0 0.0
        %491 = vmatpush.msra.mxu0 0.0
        %492 = vmatpush.msra.mxu0 0.0
        %493 = vmatpush.msra.mxu0 0.0
        %494 = vmatpush.msra.mxu0 0.0
        %495 = vmatpush.msra.mxu0 0.0
        %496 = vmatpush.msra.mxu0 0.0
        %497 = vmatpush.msra.mxu0 0.0
        %498 = vmatpush.msra.mxu0 0.0
        %499 = vmatpush.msra.mxu0 0.0
        %500 = vmatpush.msra.mxu0 0.0
        %501 = vmatpush.msra.mxu0 %v435
        %502 = vmatpush.msra.mxu0 %v434
        %503 = vmatpush.msra.mxu0 %v433
        %504 = vmatpush.msra.mxu0 %v432
        %505 = vmatmul.f32.gmra.mxu0 %v442
        %v506 = vpop.f32.mrf.mxu0
        %v507 = vadd.f32 %v438, %v506
        %508 = vmatmul.f32.gmra.mxu0 %v445
        %v509 = vpop.f32.mrf.mxu0
        %v510 = vadd.f32 %v438, %v509
        %511 = vmatmul.f32.gmra.mxu0 %v448
        %v512 = vpop.f32.mrf.mxu0
        %v513 = vadd.f32 %v438, %v512
        %514 = vmatmul.f32.gmra.mxu0 %v451
        %v515 = vpop.f32.mrf.mxu0
        %v516 = vadd.f32 %v438, %v515
        %517 = vmatmul.f32.gmra.mxu0 %v454
        %v518 = vpop.f32.mrf.mxu0
        %v519 = vadd.f32 %v438, %v518
        %520 = vmatmul.f32.gmra.mxu0 %v457
        %v521 = vpop.f32.mrf.mxu0
        %v522 = vadd.f32 %v438, %v521
        %523 = vmatmul.f32.gmra.mxu0 %v460
        %v524 = vpop.f32.mrf.mxu0
        %v525 = vadd.f32 %v438, %v524
        %526 = vmatmul.f32.gmra.mxu0 %v463
        %v527 = vpop.f32.mrf.mxu0
        %v528 = vadd.f32 %v438, %v527
        %529 = vmatmul.f32.gmra.mxu0 %v466
        %v530 = vpop.f32.mrf.mxu0
        %v531 = vadd.f32 %v438, %v530
        %532 = vmatmul.f32.gmra.mxu0 %v469
        %v533 = vpop.f32.mrf.mxu0
        %v534 = vadd.f32 %v438, %v533
        %535 = vmatmul.f32.gmra.mxu0 %v472
        %v536 = vpop.f32.mrf.mxu0
        %v537 = vadd.f32 %v438, %v536
        %538 = vmatmul.f32.gmra.mxu0 %v475
        %v539 = vpop.f32.mrf.mxu0
        %v540 = vadd.f32 %v438, %v539
        %541 = vmatmul.f32.gmra.mxu0 %v478
        %v542 = vpop.f32.mrf.mxu0
        %v543 = vadd.f32 %v438, %v542
        %544 = vmatmul.f32.gmra.mxu0 %v481
        %v545 = vpop.f32.mrf.mxu0
        %v546 = vadd.f32 %v438, %v545
        %547 = vmatmul.f32.gmra.mxu0 %v484
        %v548 = vpop.f32.mrf.mxu0
        %v549 = vadd.f32 %v438, %v548
        %550 = vmatmul.f32.gmra.mxu0 %v487
        %v551 = vpop.f32.mrf.mxu0
        %v552 = vadd.f32 %v438, %v551
        %553 = vdwg.mxu0
        %v554 = vld [vmem:[%s4] sm:$0x1]
        %v555 = vld [vmem:[#allocation2] sm:$0x1]
        %557 = vset.pattern.permute.xlu0 0
        %558 = vperm.xlu0 %557, %v555
        %v559 = vpop.permute.xlu0 %558
        %v561 = vperm.slane %v559, 0
        %562 = vmatpush.xpose.msra.mxu0 0.0
        %563 = vmatpush.xpose.msra.mxu0 0.0
        %564 = vmatpush.xpose.msra.mxu0 0.0
        %565 = vmatpush.xpose.msra.mxu0 0.0
        %566 = vmatpush.xpose.msra.mxu0 0.0
        %567 = vmatpush.xpose.msra.mxu0 0.0
        %568 = vmatpush.xpose.msra.mxu0 0.0
        %569 = vmatpush.xpose.msra.mxu0 0.0
        %570 = vmatpush.xpose.msra.mxu0 0.0
        %571 = vmatpush.xpose.msra.mxu0 0.0
        %572 = vmatpush.xpose.msra.mxu0 0.0
        %573 = vmatpush.xpose.msra.mxu0 0.0
        %574 = vmatpush.xpose.msra.mxu0 0.0
        %575 = vmatpush.xpose.msra.mxu0 0.0
        %576 = vmatpush.xpose.msra.mxu0 %v510
        %577 = vmatpush.xpose.msra.mxu0 %v507
        %578 = vmatmul.f32.gmra.mxu0 %v554
        %v579 = vpop.f32.mrf.mxu0
        %v580 = vadd.f32 %v561, %v579
        %581 = vdwg.mxu0
        %582 = vmatpush.xpose.msra.mxu0 0.0
        %583 = vmatpush.xpose.msra.mxu0 0.0
        %584 = vmatpush.xpose.msra.mxu0 0.0
        %585 = vmatpush.xpose.msra.mxu0 0.0
        %586 = vmatpush.xpose.msra.mxu0 0.0
        %587 = vmatpush.xpose.msra.mxu0 0.0
        %588 = vmatpush.xpose.msra.mxu0 0.0
        %589 = vmatpush.xpose.msra.mxu0 0.0
        %590 = vmatpush.xpose.msra.mxu0 0.0
        %591 = vmatpush.xpose.msra.mxu0 0.0
        %592 = vmatpush.xpose.msra.mxu0 0.0
        %593 = vmatpush.xpose.msra.mxu0 0.0
        %594 = vmatpush.xpose.msra.mxu0 0.0
        %595 = vmatpush.xpose.msra.mxu0 0.0
        %596 = vmatpush.xpose.msra.mxu0 %v516
        %597 = vmatpush.xpose.msra.mxu0 %v513
        %598 = vmatmul.f32.gmra.mxu0 %v554
        %v599 = vpop.f32.mrf.mxu0
        %v600 = vadd.f32 %v561, %v599
        %601 = vdwg.mxu0
        %602 = vmatpush.xpose.msra.mxu0 0.0
        %603 = vmatpush.xpose.msra.mxu0 0.0
        %604 = vmatpush.xpose.msra.mxu0 0.0
        %605 = vmatpush.xpose.msra.mxu0 0.0
        %606 = vmatpush.xpose.msra.mxu0 0.0
        %607 = vmatpush.xpose.msra.mxu0 0.0
        %608 = vmatpush.xpose.msra.mxu0 0.0
        %609 = vmatpush.xpose.msra.mxu0 0.0
        %610 = vmatpush.xpose.msra.mxu0 0.0
        %611 = vmatpush.xpose.msra.mxu0 0.0
        %612 = vmatpush.xpose.msra.mxu0 0.0
        %613 = vmatpush.xpose.msra.mxu0 0.0
        %614 = vmatpush.xpose.msra.mxu0 0.0
        %615 = vmatpush.xpose.msra.mxu0 0.0
        %616 = vmatpush.xpose.msra.mxu0 %v522
        %617 = vmatpush.xpose.msra.mxu0 %v519
        %618 = vmatmul.f32.gmra.mxu0 %v554
        %v619 = vpop.f32.mrf.mxu0
        %v620 = vadd.f32 %v561, %v619
        %621 = vdwg.mxu0
        %622 = vmatpush.xpose.msra.mxu0 0.0
        %623 = vmatpush.xpose.msra.mxu0 0.0
        %624 = vmatpush.xpose.msra.mxu0 0.0
        %625 = vmatpush.xpose.msra.mxu0 0.0
        %626 = vmatpush.xpose.msra.mxu0 0.0
        %627 = vmatpush.xpose.msra.mxu0 0.0
        %628 = vmatpush.xpose.msra.mxu0 0.0
        %629 = vmatpush.xpose.msra.mxu0 0.0
        %630 = vmatpush.xpose.msra.mxu0 0.0
        %631 = vmatpush.xpose.msra.mxu0 0.0
        %632 = vmatpush.xpose.msra.mxu0 0.0
        %633 = vmatpush.xpose.msra.mxu0 0.0
        %634 = vmatpush.xpose.msra.mxu0 0.0
        %635 = vmatpush.xpose.msra.mxu0 0.0
        %636 = vmatpush.xpose.msra.mxu0 %v528
        %637 = vmatpush.xpose.msra.mxu0 %v525
        %638 = vmatmul.f32.gmra.mxu0 %v554
        %v639 = vpop.f32.mrf.mxu0
        %v640 = vadd.f32 %v561, %v639
        %641 = vdwg.mxu0
        %642 = vmatpush.xpose.msra.mxu0 0.0
        %643 = vmatpush.xpose.msra.mxu0 0.0
        %644 = vmatpush.xpose.msra.mxu0 0.0
        %645 = vmatpush.xpose.msra.mxu0 0.0
        %646 = vmatpush.xpose.msra.mxu0 0.0
        %647 = vmatpush.xpose.msra.mxu0 0.0
        %648 = vmatpush.xpose.msra.mxu0 0.0
        %649 = vmatpush.xpose.msra.mxu0 0.0
        %650 = vmatpush.xpose.msra.mxu0 0.0
        %651 = vmatpush.xpose.msra.mxu0 0.0
        %652 = vmatpush.xpose.msra.mxu0 0.0
        %653 = vmatpush.xpose.msra.mxu0 0.0
        %654 = vmatpush.xpose.msra.mxu0 0.0
        %655 = vmatpush.xpose.msra.mxu0 0.0
        %656 = vmatpush.xpose.msra.mxu0 %v534
        %657 = vmatpush.xpose.msra.mxu0 %v531
        %658 = vmatmul.f32.gmra.mxu0 %v554
        %v659 = vpop.f32.mrf.mxu0
        %v660 = vadd.f32 %v561, %v659
        %661 = vdwg.mxu0
        %662 = vmatpush.xpose.msra.mxu0 0.0
        %663 = vmatpush.xpose.msra.mxu0 0.0
        %664 = vmatpush.xpose.msra.mxu0 0.0
        %665 = vmatpush.xpose.msra.mxu0 0.0
        %666 = vmatpush.xpose.msra.mxu0 0.0
        %667 = vmatpush.xpose.msra.mxu0 0.0
        %668 = vmatpush.xpose.msra.mxu0 0.0
        %669 = vmatpush.xpose.msra.mxu0 0.0
        %670 = vmatpush.xpose.msra.mxu0 0.0
        %671 = vmatpush.xpose.msra.mxu0 0.0
        %672 = vmatpush.xpose.msra.mxu0 0.0
        %673 = vmatpush.xpose.msra.mxu0 0.0
        %674 = vmatpush.xpose.msra.mxu0 0.0
        %675 = vmatpush.xpose.msra.mxu0 0.0
        %676 = vmatpush.xpose.msra.mxu0 %v540
        %677 = vmatpush.xpose.msra.mxu0 %v537
        %678 = vmatmul.f32.gmra.mxu0 %v554
        %v679 = vpop.f32.mrf.mxu0
        %v680 = vadd.f32 %v561, %v679
        %681 = vdwg.mxu0
        %682 = vmatpush.xpose.msra.mxu0 0.0
        %683 = vmatpush.xpose.msra.mxu0 0.0
        %684 = vmatpush.xpose.msra.mxu0 0.0
        %685 = vmatpush.xpose.msra.mxu0 0.0
        %686 = vmatpush.xpose.msra.mxu0 0.0
        %687 = vmatpush.xpose.msra.mxu0 0.0
        %688 = vmatpush.xpose.msra.mxu0 0.0
        %689 = vmatpush.xpose.msra.mxu0 0.0
        %690 = vmatpush.xpose.msra.mxu0 0.0
        %691 = vmatpush.xpose.msra.mxu0 0.0
        %692 = vmatpush.xpose.msra.mxu0 0.0
        %693 = vmatpush.xpose.msra.mxu0 0.0
        %694 = vmatpush.xpose.msra.mxu0 0.0
        %695 = vmatpush.xpose.msra.mxu0 0.0
        %696 = vmatpush.xpose.msra.mxu0 %v546
        %697 = vmatpush.xpose.msra.mxu0 %v543
        %698 = vmatmul.f32.gmra.mxu0 %v554
        %v699 = vpop.f32.mrf.mxu0
        %v700 = vadd.f32 %v561, %v699
        %701 = vdwg.mxu0
        %702 = vmatpush.xpose.msra.mxu0 0.0
        %703 = vmatpush.xpose.msra.mxu0 0.0
        %704 = vmatpush.xpose.msra.mxu0 0.0
        %705 = vmatpush.xpose.msra.mxu0 0.0
        %706 = vmatpush.xpose.msra.mxu0 0.0
        %707 = vmatpush.xpose.msra.mxu0 0.0
        %708 = vmatpush.xpose.msra.mxu0 0.0
        %709 = vmatpush.xpose.msra.mxu0 0.0
        %710 = vmatpush.xpose.msra.mxu0 0.0
        %711 = vmatpush.xpose.msra.mxu0 0.0
        %712 = vmatpush.xpose.msra.mxu0 0.0
        %713 = vmatpush.xpose.msra.mxu0 0.0
        %714 = vmatpush.xpose.msra.mxu0 0.0
        %715 = vmatpush.xpose.msra.mxu0 0.0
        %716 = vmatpush.xpose.msra.mxu0 %v552
        %717 = vmatpush.xpose.msra.mxu0 %v549
        %718 = vmatmul.f32.gmra.mxu0 %v554
        %v719 = vpop.f32.mrf.mxu0
        %v720 = vadd.f32 %v561, %v719
        %721 = vdwg.mxu0
        %v722 = vld [vmem:[%s410] sm:$0x1]
        %v723 = vld [vmem:[%s410 + $0x1] sm:$0x1]
        %v724 = vld [vmem:[%s410 + $0x2] sm:$0x1]
        %v725 = vld [vmem:[%s410 + $0x3] sm:$0x1]
        %v726 = vld [vmem:[%s410 + $0x4] sm:$0x1]
        %v727 = vld [vmem:[%s410 + $0x5] sm:$0x1]
        %v728 = vld [vmem:[%s410 + $0x6] sm:$0x1]
        %v729 = vld [vmem:[%s410 + $0x7] sm:$0x1]
        %vm730 = vcmp.gt.f32.partialorder %v722, 0.5
        %vm731 = vcmp.gt.f32.partialorder %v723, 0.5
        %vm732 = vcmp.gt.f32.partialorder %v724, 0.5
        %vm733 = vcmp.gt.f32.partialorder %v725, 0.5
        %vm734 = vcmp.gt.f32.partialorder %v726, 0.5
        %vm735 = vcmp.gt.f32.partialorder %v727, 0.5
        %vm736 = vcmp.gt.f32.partialorder %v728, 0.5
        %vm737 = vcmp.gt.f32.partialorder %v729, 0.5
        %v738 = vsel %vm730, -inf, %v580
        %v739 = vsel %vm731, -inf, %v600
        %v740 = vsel %vm732, -inf, %v620
        %v741 = vsel %vm733, -inf, %v640
        %v742 = vsel %vm734, -inf, %v660
        %v743 = vsel %vm735, -inf, %v680
        %v744 = vsel %vm736, -inf, %v700
        %v745 = vsel %vm737, -inf, %v720
        %vm746 = vcmask 122880
        %v747 = vsel %vm746, %v738, -inf
        %748 = vmax.xlane.f32.xlu0 %v747
        %v749 = vpop.xlane.xlu0 %748
        %v750 = vsel %vm746, %v739, -inf
        %751 = vmax.xlane.f32.xlu0 %v750
        %v752 = vpop.xlane.xlu0 %751
        %v753 = vsel %vm746, %v740, -inf
        %754 = vmax.xlane.f32.xlu0 %v753
        %v755 = vpop.xlane.xlu0 %754
        %v756 = vsel %vm746, %v741, -inf
        %757 = vmax.xlane.f32.xlu0 %v756
        %v758 = vpop.xlane.xlu0 %757
        %v759 = vsel %vm746, %v742, -inf
        %760 = vmax.xlane.f32.xlu0 %v759
        %v761 = vpop.xlane.xlu0 %760
        %v762 = vsel %vm746, %v743, -inf
        %763 = vmax.xlane.f32.xlu0 %v762
        %v764 = vpop.xlane.xlu0 %763
        %v765 = vsel %vm746, %v744, -inf
        %766 = vmax.xlane.f32.xlu0 %v765
        %v767 = vpop.xlane.xlu0 %766
        %v768 = vsel %vm746, %v745, -inf
        %769 = vmax.xlane.f32.xlu0 %v768
        %v770 = vpop.xlane.xlu0 %769
        %v771 = vsub.f32 %v738, %v749
        %v772 = vsub.f32 %v739, %v752
        %v773 = vsub.f32 %v740, %v755
        %v774 = vsub.f32 %v741, %v758
        %v775 = vsub.f32 %v742, %v761
        %v776 = vsub.f32 %v743, %v764
        %v777 = vsub.f32 %v744, %v767
        %v778 = vsub.f32 %v745, %v770
        %v779 = vmul.f32 %v771, 1.442695
        %v780 = vpow.pop %v779
        %v781 = vmul.f32 %v772, 1.442695
        %v782 = vpow.pop %v781
        %v783 = vmul.f32 %v773, 1.442695
        %v784 = vpow.pop %v783
        %v785 = vmul.f32 %v774, 1.442695
        %v786 = vpow.pop %v785
        %v787 = vmul.f32 %v775, 1.442695
        %v788 = vpow.pop %v787
        %v789 = vmul.f32 %v776, 1.442695
        %v790 = vpow.pop %v789
        %v791 = vmul.f32 %v777, 1.442695
        %v792 = vpow.pop %v791
        %v793 = vmul.f32 %v778, 1.442695
        %v794 = vpow.pop %v793
        %v795 = vsel %vm746, %v780, 0.0
        %796 = vadd.xlane.f32.xlu0 %v795
        %v797 = vpop.xlane.xlu0 %796
        %v798 = vsel %vm746, %v782, 0.0
        %799 = vadd.xlane.f32.xlu0 %v798
        %v800 = vpop.xlane.xlu0 %799
        %v801 = vsel %vm746, %v784, 0.0
        %802 = vadd.xlane.f32.xlu0 %v801
        %v803 = vpop.xlane.xlu0 %802
        %v804 = vsel %vm746, %v786, 0.0
        %805 = vadd.xlane.f32.xlu0 %v804
        %v806 = vpop.xlane.xlu0 %805
        %v807 = vsel %vm746, %v788, 0.0
        %808 = vadd.xlane.f32.xlu0 %v807
        %v809 = vpop.xlane.xlu0 %808
        %v810 = vsel %vm746, %v790, 0.0
        %811 = vadd.xlane.f32.xlu0 %v810
        %v812 = vpop.xlane.xlu0 %811
        %v813 = vsel %vm746, %v792, 0.0
        %814 = vadd.xlane.f32.xlu0 %v813
        %v815 = vpop.xlane.xlu0 %814
        %v816 = vsel %vm746, %v794, 0.0
        %817 = vadd.xlane.f32.xlu0 %v816
        %v818 = vpop.xlane.xlu0 %817
        %v819 = vrcp.pop %v797
        %v820 = vmul.f32 %v797, %v819
        %v821 = vsub.f32 1.0, %v820
        %v822 = vmul.f32 %v819, %v821
        %v823 = vadd.f32 %v819, %v822
        %vm824 = vweird.f32 %v797
        %vm825 = vweird.f32 %v819
        %vm826 = vmor %vm824, %vm825
        %v827 = vsel %vm826, %v819, %v823
        %v828 = vand.u32 2147483647, %v797
        %vm829 = vcmp.eq.f32.partialorder %v828, 8.507059e+37
        %v830 = vand.u32 %v797, 2147483648
        %v831 = vor.u32 1.1754944e-38, %v830
        %v832 = vsel %vm829, %v831, %v827
        %v833 = vmul.f32 %v780, %v832
        %v834 = vrcp.pop %v800
        %v835 = vmul.f32 %v800, %v834
        %v836 = vsub.f32 1.0, %v835
        %v837 = vmul.f32 %v834, %v836
        %v838 = vadd.f32 %v834, %v837
        %vm839 = vweird.f32 %v800
        %vm840 = vweird.f32 %v834
        %vm841 = vmor %vm839, %vm840
        %v842 = vsel %vm841, %v834, %v838
        %v843 = vand.u32 2147483647, %v800
        %vm844 = vcmp.eq.f32.partialorder %v843, 8.507059e+37
        %v845 = vand.u32 %v800, 2147483648
        %v846 = vor.u32 1.1754944e-38, %v845
        %v847 = vsel %vm844, %v846, %v842
        %v848 = vmul.f32 %v782, %v847
        %v849 = vrcp.pop %v803
        %v850 = vmul.f32 %v803, %v849
        %v851 = vsub.f32 1.0, %v850
        %v852 = vmul.f32 %v849, %v851
        %v853 = vadd.f32 %v849, %v852
        %vm854 = vweird.f32 %v803
        %vm855 = vweird.f32 %v849
        %vm856 = vmor %vm854, %vm855
        %v857 = vsel %vm856, %v849, %v853
        %v858 = vand.u32 2147483647, %v803
        %vm859 = vcmp.eq.f32.partialorder %v858, 8.507059e+37
        %v860 = vand.u32 %v803, 2147483648
        %v861 = vor.u32 1.1754944e-38, %v860
        %v862 = vsel %vm859, %v861, %v857
        %v863 = vmul.f32 %v784, %v862
        %v864 = vrcp.pop %v806
        %v865 = vmul.f32 %v806, %v864
        %v866 = vsub.f32 1.0, %v865
        %v867 = vmul.f32 %v864, %v866
        %v868 = vadd.f32 %v864, %v867
        %vm869 = vweird.f32 %v806
        %vm870 = vweird.f32 %v864
        %vm871 = vmor %vm869, %vm870
        %v872 = vsel %vm871, %v864, %v868
        %v873 = vand.u32 2147483647, %v806
        %vm874 = vcmp.eq.f32.partialorder %v873, 8.507059e+37
        %v875 = vand.u32 %v806, 2147483648
        %v876 = vor.u32 1.1754944e-38, %v875
        %v877 = vsel %vm874, %v876, %v872
        %v878 = vmul.f32 %v786, %v877
        %v879 = vrcp.pop %v809
        %v880 = vmul.f32 %v809, %v879
        %v881 = vsub.f32 1.0, %v880
        %v882 = vmul.f32 %v879, %v881
        %v883 = vadd.f32 %v879, %v882
        %vm884 = vweird.f32 %v809
        %vm885 = vweird.f32 %v879
        %vm886 = vmor %vm884, %vm885
        %v887 = vsel %vm886, %v879, %v883
        %v888 = vand.u32 2147483647, %v809
        %vm889 = vcmp.eq.f32.partialorder %v888, 8.507059e+37
        %v890 = vand.u32 %v809, 2147483648
        %v891 = vor.u32 1.1754944e-38, %v890
        %v892 = vsel %vm889, %v891, %v887
        %v893 = vmul.f32 %v788, %v892
        %v894 = vrcp.pop %v812
        %v895 = vmul.f32 %v812, %v894
        %v896 = vsub.f32 1.0, %v895
        %v897 = vmul.f32 %v894, %v896
        %v898 = vadd.f32 %v894, %v897
        %vm899 = vweird.f32 %v812
        %vm900 = vweird.f32 %v894
        %vm901 = vmor %vm899, %vm900
        %v902 = vsel %vm901, %v894, %v898
        %v903 = vand.u32 2147483647, %v812
        %vm904 = vcmp.eq.f32.partialorder %v903, 8.507059e+37
        %v905 = vand.u32 %v812, 2147483648
        %v906 = vor.u32 1.1754944e-38, %v905
        %v907 = vsel %vm904, %v906, %v902
        %v908 = vmul.f32 %v790, %v907
        %v909 = vrcp.pop %v815
        %v910 = vmul.f32 %v815, %v909
        %v911 = vsub.f32 1.0, %v910
        %v912 = vmul.f32 %v909, %v911
        %v913 = vadd.f32 %v909, %v912
        %vm914 = vweird.f32 %v815
        %vm915 = vweird.f32 %v909
        %vm916 = vmor %vm914, %vm915
        %v917 = vsel %vm916, %v909, %v913
        %v918 = vand.u32 2147483647, %v815
        %vm919 = vcmp.eq.f32.partialorder %v918, 8.507059e+37
        %v920 = vand.u32 %v815, 2147483648
        %v921 = vor.u32 1.1754944e-38, %v920
        %v922 = vsel %vm919, %v921, %v917
        %v923 = vmul.f32 %v792, %v922
        %v924 = vrcp.pop %v818
        %v925 = vmul.f32 %v818, %v924
        %v926 = vsub.f32 1.0, %v925
        %v927 = vmul.f32 %v924, %v926
        %v928 = vadd.f32 %v924, %v927
        %vm929 = vweird.f32 %v818
        %vm930 = vweird.f32 %v924
        %vm931 = vmor %vm929, %vm930
        %v932 = vsel %vm931, %v924, %v928
        %v933 = vand.u32 2147483647, %v818
        %vm934 = vcmp.eq.f32.partialorder %v933, 8.507059e+37
        %v935 = vand.u32 %v818, 2147483648
        %v936 = vor.u32 1.1754944e-38, %v935
        %v937 = vsel %vm934, %v936, %v932
        %v938 = vmul.f32 %v794, %v937
        %947 = vst [vmem:[#allocation1] ss:$9 sm:$0xff] %v833
        %s948 = scalar_lea.vmem [#allocation1], 1
        %949 = vst [vmem:[%s948] ss:$9 sm:$0xff] %v848
        %s950 = scalar_lea.vmem [#allocation1], 2
        %951 = vst [vmem:[%s950] ss:$9 sm:$0xff] %v863
        %s952 = scalar_lea.vmem [#allocation1], 3
        %953 = vst [vmem:[%s952] ss:$9 sm:$0xff] %v878
        %s954 = scalar_lea.vmem [#allocation1], 4
        %955 = vst [vmem:[%s954] ss:$9 sm:$0xff] %v893
        %s956 = scalar_lea.vmem [#allocation1], 5
        %957 = vst [vmem:[%s956] ss:$9 sm:$0xff] %v908
        %s958 = scalar_lea.vmem [#allocation1], 6
        %959 = vst [vmem:[%s958] ss:$9 sm:$0xff] %v923
        %s960 = scalar_lea.vmem [#allocation1], 7
        %961 = vst [vmem:[%s960] ss:$9 sm:$0xff] %v938
        %v962 = vld [vmem:[#allocation1] sm:$0xff]
        %vm964 = vcmask 130048
        %965 = vst.msk [vmem:[%s405] sm:$0xff] %vm964, %v962
        %v966 = vsel %vm964, %v833, 0
        %968 = vmatpush.msra.mxu0 0.0
        %969 = vmatpush.msra.mxu0 0.0
        %970 = vmatpush.msra.mxu0 0.0
        %971 = vmatpush.msra.mxu0 0.0
        %972 = vmatpush.msra.mxu0 0.0
        %973 = vmatpush.msra.mxu0 0.0
        %974 = vmatpush.msra.mxu0 0.0
        %975 = vmatpush.msra.mxu0 0.0
        %976 = vmatpush.msra.mxu0 0.0
        %977 = vmatpush.msra.mxu0 0.0
        %978 = vmatpush.msra.mxu0 0.0
        %979 = vmatpush.msra.mxu0 0.0
        %980 = vmatpush.msra.mxu0 0.0
        %981 = vmatpush.msra.mxu0 0.0
        %982 = vmatpush.msra.mxu0 %v510
        %983 = vmatpush.msra.mxu0 %v507
        %984 = vmatmul.f32.gmra.mxu0 %v966
        %v985 = vpop.f32.mrf.mxu0
        %v986 = vadd.f32 0.0, %v985
        %987 = vdwg.mxu0
        %v988 = vsel %vm964, %v848, 0
        %990 = vmatpush.msra.mxu0 0.0
        %991 = vmatpush.msra.mxu0 0.0
        %992 = vmatpush.msra.mxu0 0.0
        %993 = vmatpush.msra.mxu0 0.0
        %994 = vmatpush.msra.mxu0 0.0
        %995 = vmatpush.msra.mxu0 0.0
        %996 = vmatpush.msra.mxu0 0.0
        %997 = vmatpush.msra.mxu0 0.0
        %998 = vmatpush.msra.mxu0 0.0
        %999 = vmatpush.msra.mxu0 0.0
        %1000 = vmatpush.msra.mxu0 0.0
        %1001 = vmatpush.msra.mxu0 0.0
        %1002 = vmatpush.msra.mxu0 0.0
        %1003 = vmatpush.msra.mxu0 0.0
        %1004 = vmatpush.msra.mxu0 %v516
        %1005 = vmatpush.msra.mxu0 %v513
        %1006 = vmatmul.f32.gmra.mxu0 %v988
        %v1007 = vpop.f32.mrf.mxu0
        %v1008 = vadd.f32 0.0, %v1007
        %1009 = vdwg.mxu0
        %v1010 = vsel %vm964, %v863, 0
        %1012 = vmatpush.msra.mxu0 0.0
        %1013 = vmatpush.msra.mxu0 0.0
        %1014 = vmatpush.msra.mxu0 0.0
        %1015 = vmatpush.msra.mxu0 0.0
        %1016 = vmatpush.msra.mxu0 0.0
        %1017 = vmatpush.msra.mxu0 0.0
        %1018 = vmatpush.msra.mxu0 0.0
        %1019 = vmatpush.msra.mxu0 0.0
        %1020 = vmatpush.msra.mxu0 0.0
        %1021 = vmatpush.msra.mxu0 0.0
        %1022 = vmatpush.msra.mxu0 0.0
        %1023 = vmatpush.msra.mxu0 0.0
        %1024 = vmatpush.msra.mxu0 0.0
        %1025 = vmatpush.msra.mxu0 0.0
        %1026 = vmatpush.msra.mxu0 %v522
        %1027 = vmatpush.msra.mxu0 %v519
        %1028 = vmatmul.f32.gmra.mxu0 %v1010
        %v1029 = vpop.f32.mrf.mxu0
        %v1030 = vadd.f32 0.0, %v1029
        %1031 = vdwg.mxu0
        %v1032 = vsel %vm964, %v878, 0
        %1034 = vmatpush.msra.mxu0 0.0
        %1035 = vmatpush.msra.mxu0 0.0
        %1036 = vmatpush.msra.mxu0 0.0
        %1037 = vmatpush.msra.mxu0 0.0
        %1038 = vmatpush.msra.mxu0 0.0
        %1039 = vmatpush.msra.mxu0 0.0
        %1040 = vmatpush.msra.mxu0 0.0
        %1041 = vmatpush.msra.mxu0 0.0
        %1042 = vmatpush.msra.mxu0 0.0
        %1043 = vmatpush.msra.mxu0 0.0
        %1044 = vmatpush.msra.mxu0 0.0
        %1045 = vmatpush.msra.mxu0 0.0
        %1046 = vmatpush.msra.mxu0 0.0
        %1047 = vmatpush.msra.mxu0 0.0
        %1048 = vmatpush.msra.mxu0 %v528
        %1049 = vmatpush.msra.mxu0 %v525
        %1050 = vmatmul.f32.gmra.mxu0 %v1032
        %v1051 = vpop.f32.mrf.mxu0
        %v1052 = vadd.f32 0.0, %v1051
        %1053 = vdwg.mxu0
        %v1054 = vsel %vm964, %v893, 0
        %1056 = vmatpush.msra.mxu0 0.0
        %1057 = vmatpush.msra.mxu0 0.0
        %1058 = vmatpush.msra.mxu0 0.0
        %1059 = vmatpush.msra.mxu0 0.0
        %1060 = vmatpush.msra.mxu0 0.0
        %1061 = vmatpush.msra.mxu0 0.0
        %1062 = vmatpush.msra.mxu0 0.0
        %1063 = vmatpush.msra.mxu0 0.0
        %1064 = vmatpush.msra.mxu0 0.0
        %1065 = vmatpush.msra.mxu0 0.0
        %1066 = vmatpush.msra.mxu0 0.0
        %1067 = vmatpush.msra.mxu0 0.0
        %1068 = vmatpush.msra.mxu0 0.0
        %1069 = vmatpush.msra.mxu0 0.0
        %1070 = vmatpush.msra.mxu0 %v534
        %1071 = vmatpush.msra.mxu0 %v531
        %1072 = vmatmul.f32.gmra.mxu0 %v1054
        %v1073 = vpop.f32.mrf.mxu0
        %v1074 = vadd.f32 0.0, %v1073
        %1075 = vdwg.mxu0
        %v1076 = vsel %vm964, %v908, 0
        %1078 = vmatpush.msra.mxu0 0.0
        %1079 = vmatpush.msra.mxu0 0.0
        %1080 = vmatpush.msra.mxu0 0.0
        %1081 = vmatpush.msra.mxu0 0.0
        %1082 = vmatpush.msra.mxu0 0.0
        %1083 = vmatpush.msra.mxu0 0.0
        %1084 = vmatpush.msra.mxu0 0.0
        %1085 = vmatpush.msra.mxu0 0.0
        %1086 = vmatpush.msra.mxu0 0.0
        %1087 = vmatpush.msra.mxu0 0.0
        %1088 = vmatpush.msra.mxu0 0.0
        %1089 = vmatpush.msra.mxu0 0.0
        %1090 = vmatpush.msra.mxu0 0.0
        %1091 = vmatpush.msra.mxu0 0.0
        %1092 = vmatpush.msra.mxu0 %v540
        %1093 = vmatpush.msra.mxu0 %v537
        %1094 = vmatmul.f32.gmra.mxu0 %v1076
        %v1095 = vpop.f32.mrf.mxu0
        %v1096 = vadd.f32 0.0, %v1095
        %1097 = vdwg.mxu0
        %v1098 = vsel %vm964, %v923, 0
        %1100 = vmatpush.msra.mxu0 0.0
        %1101 = vmatpush.msra.mxu0 0.0
        %1102 = vmatpush.msra.mxu0 0.0
        %1103 = vmatpush.msra.mxu0 0.0
        %1104 = vmatpush.msra.mxu0 0.0
        %1105 = vmatpush.msra.mxu0 0.0
        %1106 = vmatpush.msra.mxu0 0.0
        %1107 = vmatpush.msra.mxu0 0.0
        %1108 = vmatpush.msra.mxu0 0.0
        %1109 = vmatpush.msra.mxu0 0.0
        %1110 = vmatpush.msra.mxu0 0.0
        %1111 = vmatpush.msra.mxu0 0.0
        %1112 = vmatpush.msra.mxu0 0.0
        %1113 = vmatpush.msra.mxu0 0.0
        %1114 = vmatpush.msra.mxu0 %v546
        %1115 = vmatpush.msra.mxu0 %v543
        %1116 = vmatmul.f32.gmra.mxu0 %v1098
        %v1117 = vpop.f32.mrf.mxu0
        %v1118 = vadd.f32 0.0, %v1117
        %1119 = vdwg.mxu0
        %v1120 = vsel %vm964, %v938, 0
        %1122 = vmatpush.msra.mxu0 0.0
        %1123 = vmatpush.msra.mxu0 0.0
        %1124 = vmatpush.msra.mxu0 0.0
        %1125 = vmatpush.msra.mxu0 0.0
        %1126 = vmatpush.msra.mxu0 0.0
        %1127 = vmatpush.msra.mxu0 0.0
        %1128 = vmatpush.msra.mxu0 0.0
        %1129 = vmatpush.msra.mxu0 0.0
        %1130 = vmatpush.msra.mxu0 0.0
        %1131 = vmatpush.msra.mxu0 0.0
        %1132 = vmatpush.msra.mxu0 0.0
        %1133 = vmatpush.msra.mxu0 0.0
        %1134 = vmatpush.msra.mxu0 0.0
        %1135 = vmatpush.msra.mxu0 0.0
        %1136 = vmatpush.msra.mxu0 %v552
        %1137 = vmatpush.msra.mxu0 %v549
        %1138 = vmatmul.f32.gmra.mxu0 %v1120
        %v1139 = vpop.f32.mrf.mxu0
        %v1140 = vadd.f32 0.0, %v1139
        %1141 = vdwg.mxu0
        %v1142 = vld [vmem:[%s6] sm:$0x1]
        %v1144 = vperm.slane %v1142, 0
        %v1146 = vadd.f32 %v986, %v1144
        %v1147 = vadd.f32 %v1008, %v1144
        %v1148 = vadd.f32 %v1030, %v1144
        %v1149 = vadd.f32 %v1052, %v1144
        %v1150 = vadd.f32 %v1074, %v1144
        %v1151 = vadd.f32 %v1096, %v1144
        %v1152 = vadd.f32 %v1118, %v1144
        %v1153 = vadd.f32 %v1140, %v1144
        %v1154 = vld [vmem:[%s7] sm:$0xff]
        %v1155 = vld [vmem:[%s7 + $0x8] sm:$0xff]
        %v1156 = vld [vmem:[%s7 + $0x10] sm:$0xff]
        %v1157 = vld [vmem:[%s7 + $0x18] sm:$0xff]
        %v1158 = vld [vmem:[%s7 + $0x20] sm:$0xff]
        %v1159 = vld [vmem:[%s7 + $0x28] sm:$0xff]
        %v1160 = vld [vmem:[%s7 + $0x30] sm:$0xff]
        %v1161 = vld [vmem:[%s7 + $0x38] sm:$0xff]
        %v1162 = vld [vmem:[%s7 + $0x40] sm:$0xff]
        %v1163 = vld [vmem:[%s7 + $0x48] sm:$0xff]
        %v1164 = vld [vmem:[%s7 + $0x50] sm:$0xff]
        %v1165 = vld [vmem:[%s7 + $0x58] sm:$0xff]
        %v1166 = vld [vmem:[%s7 + $0x60] sm:$0xff]
        %v1167 = vld [vmem:[%s7 + $0x68] sm:$0xff]
        %v1168 = vld [vmem:[%s7 + $0x70] sm:$0xff]
        %v1169 = vld [vmem:[%s7 + $0x78] sm:$0xff]
        %v1170 = vld [vmem:[#allocation3] sm:$0x1]
        %v1172 = vperm.slane %v1170, 0
        %v1182 = vrot.slane %v1147, 7
        %vm1183 = vcmask 1041409
        %v1184 = vsel %vm1183, %v1182, %v1146
        %v1185 = vrot.slane %v1148, 6
        %vm1186 = vcmask 1042434
        %v1187 = vsel %vm1186, %v1185, %v1184
        %v1188 = vrot.slane %v1149, 5
        %vm1189 = vcmask 1043459
        %v1190 = vsel %vm1189, %v1188, %v1187
        %v1191 = vrot.slane %v1150, 4
        %vm1192 = vcmask 1044484
        %v1193 = vsel %vm1192, %v1191, %v1190
        %v1194 = vrot.slane %v1151, 3
        %vm1195 = vcmask 1045509
        %v1196 = vsel %vm1195, %v1194, %v1193
        %v1197 = vrot.slane %v1152, 2
        %vm1198 = vcmask 1046534
        %v1199 = vsel %vm1198, %v1197, %v1196
        %v1200 = vrot.slane %v1153, 1
        %vm1201 = vcmask 1047559
        %v1202 = vsel %vm1201, %v1200, %v1199
        %1204 = vmatpush.msra.mxu0 %v1169
        %1205 = vmatpush.msra.mxu0 %v1168
        %1206 = vmatpush.msra.mxu0 %v1167
        %1207 = vmatpush.msra.mxu0 %v1166
        %1208 = vmatpush.msra.mxu0 %v1165
        %1209 = vmatpush.msra.mxu0 %v1164
        %1210 = vmatpush.msra.mxu0 %v1163
        %1211 = vmatpush.msra.mxu0 %v1162
        %1212 = vmatpush.msra.mxu0 %v1161
        %1213 = vmatpush.msra.mxu0 %v1160
        %1214 = vmatpush.msra.mxu0 %v1159
        %1215 = vmatpush.msra.mxu0 %v1158
        %1216 = vmatpush.msra.mxu0 %v1157
        %1217 = vmatpush.msra.mxu0 %v1156
        %1218 = vmatpush.msra.mxu0 %v1155
        %1219 = vmatpush.msra.mxu0 %v1154
        %1220 = vmatmul.f32.gmra.mxu0 %v1202
        %v1221 = vpop.f32.mrf.mxu0
        %v1222 = vadd.f32 %v1172, %v1221
        %1223 = vdwg.mxu0
        %vm1224 = vcmask 7168
        %1225 = vst.msk [vmem:[%s415] sm:$0xff] %vm1224, %v1222
        %p1226 = scmp.lt.s32.totalorder %s32, 1
        %s1227 = scalar_select %p1226, %s32, 1
        %s1228 = smul.addr %s1227, 8
        %s1229 = scalar_lea.vmem %s9, %s1228
        %s1230 = sand.u32 %s265, 1
        %s1231 = scalar_lea.sflag [#allocation6], %s1230
        %s1232 = sand.u32 %s265, 1
        %s1233 = smul.addr %s1232, 8
        %s1234 = scalar_lea.vmem [#allocation7], %s1233
        // Predicated region
        $region61: #{tpu_custom_call.1} parent=55 // pred_check
          %p1235 = pneg %p249
        $region62: #{tpu_custom_call.1} parent=55 // pred_check_branch
          %1237 = sbr.rel (%p1235) target = $region64
        $region63: #{tpu_custom_call.1} parent=55 // pred_region
          _
        $region64: #{tpu_custom_call.1} parent=55 // pred_fallthru
          _
        // Predicated region
        $region65: #{tpu_custom_call.1} parent=55 // pred_check
          %p1238 = pneg %p275
        $region66: #{tpu_custom_call.1} parent=55 // pred_check_branch
          %1240 = sbr.rel (%p1238) target = $region68
        $region67: #{tpu_custom_call.1} parent=55 // pred_region
          %1242 = vsyncadd %s1231, 0
          %s1243 = smul.addr %s32, 8
          %s1244 = scalar_lea.hbm %s10, %s1243
          %s1246 = sshll.u32 %s1234, 4
          %s1247 = int_to_ptr.vmem [resolvable:$true] %s1246
          %s1248 = sshll.u32 %s1244, 4
          %s1249 = int_to_ptr.hbm [resolvable:$true] %s1248
          %1251 = dma.vmem_to_hbm [thread:$0]  %s1247, 128, %s1249, %s1231
        $region68: #{tpu_custom_call.1} parent=55 // pred_fallthru
          _
      $region56: #{tpu_custom_call.1} parent=5 // pred_fallthru
        _
      %p1252 = scmp.le.s32.totalorder 2, %s27
      // Predicated region
      $region69: #{tpu_custom_call.1} parent=5 // pred_check
        %p1253 = pneg %p1252
      $region70: #{tpu_custom_call.1} parent=5 // pred_check_branch
        %1255 = sbr.rel (%p1253) target = $region72
      $region71: #{tpu_custom_call.1} parent=5 // pred_region
        %s1256 = ssub.s32 %s27, 2
        // Predicated region
        $region73: #{tpu_custom_call.1} parent=71 // pred_check
          %p1257 = pneg %p255
        $region74: #{tpu_custom_call.1} parent=71 // pred_check_branch
          %1259 = sbr.rel (%p1257) target = $region76
        $region75: #{tpu_custom_call.1} parent=71 // pred_region
          %p1260 = scmp.lt.s32.totalorder %s33, 1
          %s1261 = scalar_select %p1260, %s33, 1
          %s1262 = smul.addr %s1261, 8
          %s1263 = scalar_lea.vmem %s9, %s1262
        $region76: #{tpu_custom_call.1} parent=71 // pred_fallthru
          _
        // Predicated region
        $region77: #{tpu_custom_call.1} parent=71 // pred_check
          %p1264 = pneg %p281
        $region78: #{tpu_custom_call.1} parent=71 // pred_check_branch
          %1266 = sbr.rel (%p1264) target = $region80
        $region79: #{tpu_custom_call.1} parent=71 // pred_region
          %s1267 = sand.u32 %s266, 1
          %s1268 = scalar_lea.sflag [#allocation6], %s1267
          %s1269 = sand.u32 %s266, 1
          %s1270 = smul.addr %s1269, 8
          %s1271 = scalar_lea.vmem [#allocation7], %s1270
          %1273 = dma.done %s1268, 128
        $region80: #{tpu_custom_call.1} parent=71 // pred_fallthru
          _
      $region72: #{tpu_custom_call.1} parent=5 // pred_fallthru
        _
    $region6: #{tpu_custom_call.1} parent=1 // loop_footer
      %s31 = sadd.s32 1, %s27
    $region7: #{tpu_custom_call.1} parent=1 // loop_footer_branch
      %26 = sbr.rel target = $region3
    $region8: #{tpu_custom_call.1} parent=1 // loop_exit
      _
    %1274 = vsyncpa [#allocation5], 1
    %s1275 = scalar_lea.sflag [#allocation5], 1
    %1276 = vsyncpa %s1275, 1
    %1277 = vsyncpa [#allocation6], 1
    %s1278 = scalar_lea.sflag [#allocation6], 1
    %1279 = vsyncpa %s1278, 1

// kernel: tpu_custom_call.1
$region0: #{tpu_custom_call.1}
  #allocation0 [shape = 'u32[]', space=smem, size = 0x4, offset = 0x4, fixed_abs, tag = 'smem constant byte address 0x4 - core index']
  #allocation1 [shape = 'u32[72,128]{1,0:T(1,128)}', space=vmem, size = 0x9000, scoped, tag = 'internal scratch']
  #allocation2 [shape = 'f32[1,1]{1,0:T(1,128)S(1)}', space=vmem, size = 0x200, scoped, tag = 'scoped memory for tpu_custom_call.1']
  #allocation3 [shape = 'f32[1,1]{1,0:T(1,128)S(1)}', space=vmem, size = 0x200, scoped, tag = 'scoped memory for tpu_custom_call.1']
  %s0 = inlined_call_operand.hbm [shape: f32[16,16,32], index: 0, kind: input, shape index: {}]
  %s1 = inlined_call_operand.vmem [shape: f32[16,1,16], index: 1, kind: input, shape index: {}]
  %s2 = inlined_call_operand.vmem [shape: f32[32,128], index: 2, kind: input, shape index: {}]
  %s3 = inlined_call_operand.vmem [shape: f32[1,128], index: 3, kind: input, shape index: {}]
  %s4 = inlined_call_operand.vmem [shape: f32[1,128], index: 4, kind: input, shape index: {}]
  %s5 = inlined_call_operand.<no memory space> [shape: f32[1,1], index: 5, kind: input, shape index: {}]
  %s6 = inlined_call_operand.vmem [shape: f32[1,128], index: 6, kind: input, shape index: {}]
  %s7 = inlined_call_operand.vmem [shape: f32[128,1], index: 7, kind: input, shape index: {}]
  %s8 = inlined_call_operand.<no memory space> [shape: f32[1,1], index: 8, kind: input, shape index: {}]
  %s9 = inlined_call_operand.vmem [shape: f32[16,1], index: 9, kind: output, shape index: {0}]
  %s10 = inlined_call_operand.hbm [shape: f32[16,16], index: 10, kind: output, shape index: {1}]
  %11 = xla_tuple %s9, %s10
  %s12 = sld [smem:[#allocation0]]
  $region81: #{tpu_custom_call.1} parent=0
    _
  %s14 = ssub.s32 1, %s12
  %s15 = scalar_select 0, %s14, %s12
  %v16 = vstv %s5
  %17 = vst [vmem:[#allocation2] sm:$0x1] %v16
  %v18 = vstv %s8
  %19 = vst [vmem:[#allocation3] sm:$0x1] %v18
  $region1: #{tpu_custom_call.1} parent=0
    #allocation4 [shape = 'u8[131072]{0}', space=vmem, size = 0x20000, scoped, tag = 'input window, operand 0']
    #allocation5 [shape = 's32[2]{0}', space=sflag, size = 0x8, scoped, tag = 'scoped memory for tpu_custom_call.1']
    #allocation6 [shape = 's32[2]{0}', space=sflag, size = 0x8, scoped, tag = 'scoped memory for tpu_custom_call.1']
    #allocation7 [shape = 'u8[8192]{0}', space=vmem, size = 0x2000, scoped, tag = 'output window, operand 1']
    %20 = vsyncpa [#allocation5], 0
    %s21 = scalar_lea.sflag [#allocation5], 1
    %22 = vsyncpa %s21, 0
    %23 = vsyncpa [#allocation6], 0
    %s24 = scalar_lea.sflag [#allocation6], 1
    %25 = vsyncpa %s24, 0
    loop: start=0, step=1, limit=4
    $region2: #{tpu_custom_call.1} parent=1 // loop_pre_header
      _
    $region3: #{tpu_custom_call.1} parent=1 // loop_header
      %s27 = sphi 0, %s31
      %p28 = scmp.ge.s32.totalorder %s27, 4
      %s37 = sphi 0, %s39
      %s40 = sphi 0, %s37
      %s41 = sphi 0, %s40
      %s57 = sphi 0, %s41
      %s63 = sphi 0, %s65
      %s66 = sphi 0, %s63
      %s67 = sphi 0, %s66
      %s83 = sphi 0, %s67
      %s87 = sphi 0, %s87
      %s89 = sphi 0, %s87
      %s90 = sphi 0, %s89
      %s104 = sphi 0, %s90
      %s108 = sphi 0, %s108
      %s110 = sphi 0, %s108
      %s111 = sphi 0, %s110
      %s125 = sphi 0, %s111
      %s129 = sphi 0, %s129
      %s131 = sphi 0, %s129
      %s132 = sphi 0, %s131
      %s146 = sphi 0, %s132
      %s150 = sphi 0, %s150
      %s152 = sphi 0, %s150
      %s153 = sphi 0, %s152
      %s167 = sphi 0, %s153
      %s171 = sphi 0, %s171
      %s173 = sphi 0, %s171
      %s174 = sphi 0, %s173
      %s188 = sphi 0, %s174
      %s192 = sphi 0, %s192
      %s194 = sphi 0, %s192
      %s195 = sphi 0, %s194
      %s209 = sphi 0, %s195
      %s213 = sphi 0, %s213
      %s215 = sphi 0, %s213
      %s216 = sphi 0, %s215
      %s230 = sphi 0, %s216
      %s236 = sphi 0, %s238
      %s239 = sphi 0, %s236
      %s240 = sphi 0, %s239
      %s256 = sphi 0, %s240
      %s262 = sphi 0, %s264
      %s265 = sphi 0, %s262
      %s266 = sphi 0, %s265
      %s282 = sphi 0, %s266
    $region4: #{tpu_custom_call.1} parent=1 // loop_header_branch
      %30 = sbr.rel (%p28) target = $region8
    $region5: #{tpu_custom_call.1} parent=1 // loop_body
      %s32 = ssub.s32 %s27, 1
      %s33 = ssub.s32 %s27, 2
      %s34 = sadd.s32 %s27, 1
      %s35 = ssub.s32 %s27, %s34
      %p36 = scmp.eq.s32.totalorder %s35, 0
      %s38 = sadd.s32 %s37, 1
      %s39 = scalar_select %p36, %s37, %s38
      %p42 = pneg %p36
      %p43 = scmp.eq.s32.totalorder %s27, 1
      %p44 = por %p42, %p43
      %p45 = scmp.ne.s32.totalorder %s37, %s40
      %p46 = scmp.eq.s32.totalorder %s27, 0
      %p47 = por %p45, %p46
      %p48 = scmp.ne.s32.totalorder %s37, %s40
      %p49 = scmp.eq.s32.totalorder %s32, 1
      %p50 = por %p48, %p49
      %p51 = scmp.ne.s32.totalorder %s40, %s41
      %p52 = scmp.eq.s32.totalorder %s32, 0
      %p53 = por %p51, %p52
      %p54 = scmp.ne.s32.totalorder %s40, %s41
      %p55 = scmp.eq.s32.totalorder %s33, 1
      %p56 = por %p54, %p55
      %p58 = scmp.ne.s32.totalorder %s41, %s57
      %p59 = scmp.eq.s32.totalorder %s33, 0
      %p60 = por %p58, %p59
      %s61 = ssub.s32 %s27, %s34
      %p62 = scmp.eq.s32.totalorder %s61, 0
      %s64 = sadd.s32 %s63, 1
      %s65 = scalar_select %p62, %s63, %s64
      %p68 = pneg %p62
      %p69 = scmp.eq.s32.totalorder %s27, 1
      %p70 = por %p68, %p69
      %p71 = scmp.ne.s32.totalorder %s63, %s66
      %p72 = scmp.eq.s32.totalorder %s27, 0
      %p73 = por %p71, %p72
      %p74 = scmp.ne.s32.totalorder %s63, %s66
      %p75 = scmp.eq.s32.totalorder %s32, 1
      %p76 = por %p74, %p75
      %p77 = scmp.ne.s32.totalorder %s66, %s67
      %p78 = scmp.eq.s32.totalorder %s32, 0
      %p79 = por %p77, %p78
      %p80 = scmp.ne.s32.totalorder %s66, %s67
      %p81 = scmp.eq.s32.totalorder %s33, 1
      %p82 = por %p80, %p81
      %p84 = scmp.ne.s32.totalorder %s67, %s83
      %p85 = scmp.eq.s32.totalorder %s33, 0
      %p86 = por %p84, %p85
      %s88 = sadd.s32 %s87, 1
      %p91 = scmp.eq.s32.totalorder %s27, 1
      %p92 = scmp.ne.s32.totalorder %s87, %s89
      %p93 = scmp.eq.s32.totalorder %s27, 0
      %p94 = por %p92, %p93
      %p95 = scmp.ne.s32.totalorder %s87, %s89
      %p96 = scmp.eq.s32.totalorder %s32, 1
      %p97 = por %p95, %p96
      %p98 = scmp.ne.s32.totalorder %s89, %s90
      %p99 = scmp.eq.s32.totalorder %s32, 0
      %p100 = por %p98, %p99
      %p101 = scmp.ne.s32.totalorder %s89, %s90
      %p102 = scmp.eq.s32.totalorder %s33, 1
      %p103 = por %p101, %p102
      %p105 = scmp.ne.s32.totalorder %s90, %s104
      %p106 = scmp.eq.s32.totalorder %s33, 0
      %p107 = por %p105, %p106
      %s109 = sadd.s32 %s108, 1
      %p112 = scmp.eq.s32.totalorder %s27, 1
      %p113 = scmp.ne.s32.totalorder %s108, %s110
      %p114 = scmp.eq.s32.totalorder %s27, 0
      %p115 = por %p113, %p114
      %p116 = scmp.ne.s32.totalorder %s108, %s110
      %p117 = scmp.eq.s32.totalorder %s32, 1
      %p118 = por %p116, %p117
      %p119 = scmp.ne.s32.totalorder %s110, %s111
      %p120 = scmp.eq.s32.totalorder %s32, 0
      %p121 = por %p119, %p120
      %p122 = scmp.ne.s32.totalorder %s110, %s111
      %p123 = scmp.eq.s32.totalorder %s33, 1
      %p124 = por %p122, %p123
      %p126 = scmp.ne.s32.totalorder %s111, %s125
      %p127 = scmp.eq.s32.totalorder %s33, 0
      %p128 = por %p126, %p127
      %s130 = sadd.s32 %s129, 1
      %p133 = scmp.eq.s32.totalorder %s27, 1
      %p134 = scmp.ne.s32.totalorder %s129, %s131
      %p135 = scmp.eq.s32.totalorder %s27, 0
      %p136 = por %p134, %p135
      %p137 = scmp.ne.s32.totalorder %s129, %s131
      %p138 = scmp.eq.s32.totalorder %s32, 1
      %p139 = por %p137, %p138
      %p140 = scmp.ne.s32.totalorder %s131, %s132
      %p141 = scmp.eq.s32.totalorder %s32, 0
      %p142 = por %p140, %p141
      %p143 = scmp.ne.s32.totalorder %s131, %s132
      %p144 = scmp.eq.s32.totalorder %s33, 1
      %p145 = por %p143, %p144
      %p147 = scmp.ne.s32.totalorder %s132, %s146
      %p148 = scmp.eq.s32.totalorder %s33, 0
      %p149 = por %p147, %p148
      %s151 = sadd.s32 %s150, 1
      %p154 = scmp.eq.s32.totalorder %s27, 1
      %p155 = scmp.ne.s32.totalorder %s150, %s152
      %p156 = scmp.eq.s32.totalorder %s27, 0
      %p157 = por %p155, %p156
      %p158 = scmp.ne.s32.totalorder %s150, %s152
      %p159 = scmp.eq.s32.totalorder %s32, 1
      %p160 = por %p158, %p159
      %p161 = scmp.ne.s32.totalorder %s152, %s153
      %p162 = scmp.eq.s32.totalorder %s32, 0
      %p163 = por %p161, %p162
      %p164 = scmp.ne.s32.totalorder %s152, %s153
      %p165 = scmp.eq.s32.totalorder %s33, 1
      %p166 = por %p164, %p165
      %p168 = scmp.ne.s32.totalorder %s153, %s167
      %p169 = scmp.eq.s32.totalorder %s33, 0
      %p170 = por %p168, %p169
      %s172 = sadd.s32 %s171, 1
      %p175 = scmp.eq.s32.totalorder %s27, 1
      %p176 = scmp.ne.s32.totalorder %s171, %s173
      %p177 = scmp.eq.s32.totalorder %s27, 0
      %p178 = por %p176, %p177
      %p179 = scmp.ne.s32.totalorder %s171, %s173
      %p180 = scmp.eq.s32.totalorder %s32, 1
      %p181 = por %p179, %p180
      %p182 = scmp.ne.s32.totalorder %s173, %s174
      %p183 = scmp.eq.s32.totalorder %s32, 0
      %p184 = por %p182, %p183
      %p185 = scmp.ne.s32.totalorder %s173, %s174
      %p186 = scmp.eq.s32.totalorder %s33, 1
      %p187 = por %p185, %p186
      %p189 = scmp.ne.s32.totalorder %s174, %s188
      %p190 = scmp.eq.s32.totalorder %s33, 0
      %p191 = por %p189, %p190
      %s193 = sadd.s32 %s192, 1
      %p196 = scmp.eq.s32.totalorder %s27, 1
      %p197 = scmp.ne.s32.totalorder %s192, %s194
      %p198 = scmp.eq.s32.totalorder %s27, 0
      %p199 = por %p197, %p198
      %p200 = scmp.ne.s32.totalorder %s192, %s194
      %p201 = scmp.eq.s32.totalorder %s32, 1
      %p202 = por %p200, %p201
      %p203 = scmp.ne.s32.totalorder %s194, %s195
      %p204 = scmp.eq.s32.totalorder %s32, 0
      %p205 = por %p203, %p204
      %p206 = scmp.ne.s32.totalorder %s194, %s195
      %p207 = scmp.eq.s32.totalorder %s33, 1
      %p208 = por %p206, %p207
      %p210 = scmp.ne.s32.totalorder %s195, %s209
      %p211 = scmp.eq.s32.totalorder %s33, 0
      %p212 = por %p210, %p211
      %s214 = sadd.s32 %s213, 1
      %p217 = scmp.eq.s32.totalorder %s27, 1
      %p218 = scmp.ne.s32.totalorder %s213, %s215
      %p219 = scmp.eq.s32.totalorder %s27, 0
      %p220 = por %p218, %p219
      %p221 = scmp.ne.s32.totalorder %s213, %s215
      %p222 = scmp.eq.s32.totalorder %s32, 1
      %p223 = por %p221, %p222
      %p224 = scmp.ne.s32.totalorder %s215, %s216
      %p225 = scmp.eq.s32.totalorder %s32, 0
      %p226 = por %p224, %p225
      %p227 = scmp.ne.s32.totalorder %s215, %s216
      %p228 = scmp.eq.s32.totalorder %s33, 1
      %p229 = por %p227, %p228
      %p231 = scmp.ne.s32.totalorder %s216, %s230
      %p232 = scmp.eq.s32.totalorder %s33, 0
      %p233 = por %p231, %p232
      %s234 = ssub.s32 %s27, %s34
      %p235 = scmp.eq.s32.totalorder %s234, 0
      %s237 = sadd.s32 %s236, 1
      %s238 = scalar_select %p235, %s236, %s237
      %p241 = pneg %p235
      %p242 = scmp.eq.s32.totalorder %s27, 1
      %p243 = por %p241, %p242
      %p244 = scmp.ne.s32.totalorder %s236, %s239
      %p245 = scmp.eq.s32.totalorder %s27, 0
      %p246 = por %p244, %p245
      %p247 = scmp.ne.s32.totalorder %s236, %s239
      %p248 = scmp.eq.s32.totalorder %s32, 1
      %p249 = por %p247, %p248
      %p250 = scmp.ne.s32.totalorder %s239, %s240
      %p251 = scmp.eq.s32.totalorder %s32, 0
      %p252 = por %p250, %p251
      %p253 = scmp.ne.s32.totalorder %s239, %s240
      %p254 = scmp.eq.s32.totalorder %s33, 1
      %p255 = por %p253, %p254
      %p257 = scmp.ne.s32.totalorder %s240, %s256
      %p258 = scmp.eq.s32.totalorder %s33, 0
      %p259 = por %p257, %p258
      %s260 = ssub.s32 %s27, %s34
      %p261 = scmp.eq.s32.totalorder %s260, 0
      %s263 = sadd.s32 %s262, 1
      %s264 = scalar_select %p261, %s262, %s263
      %p267 = pneg %p261
      %p268 = scmp.eq.s32.totalorder %s27, 1
      %p269 = por %p267, %p268
      %p270 = scmp.ne.s32.totalorder %s262, %s265
      %p271 = scmp.eq.s32.totalorder %s27, 0
      %p272 = por %p270, %p271
      %p273 = scmp.ne.s32.totalorder %s262, %s265
      %p274 = scmp.eq.s32.totalorder %s32, 1
      %p275 = por %p273, %p274
      %p276 = scmp.ne.s32.totalorder %s265, %s266
      %p277 = scmp.eq.s32.totalorder %s32, 0
      %p278 = por %p276, %p277
      %p279 = scmp.ne.s32.totalorder %s265, %s266
      %p280 = scmp.eq.s32.totalorder %s33, 1
      %p281 = por %p279, %p280
      %p283 = scmp.ne.s32.totalorder %s266, %s282
      %p284 = scmp.eq.s32.totalorder %s33, 0
      %p285 = por %p283, %p284
      %p286 = scmp.le.s32.totalorder 1, %s27
      %p287 = scmp.lt.s32.totalorder %s27, 3
      %p288 = pnand %p286, %p287
      %p289 = pneg %p288
      // Predicated region
      $region9: #{tpu_custom_call.1} parent=5 // pred_check
        _
      $region10: #{tpu_custom_call.1} parent=5 // pred_check_branch
        %291 = sbr.rel (%p288) target = $region12
      $region11: #{tpu_custom_call.1} parent=5 // pred_region
        %s292 = ssub.s32 %s27, 1
        // Predicated region
        $region13: #{tpu_custom_call.1} parent=11 // pred_check
          %p293 = pneg %p100
        $region14: #{tpu_custom_call.1} parent=11 // pred_check_branch
          %295 = sbr.rel (%p293) target = $region16
        $region15: #{tpu_custom_call.1} parent=11 // pred_region
          _
        $region16: #{tpu_custom_call.1} parent=11 // pred_fallthru
          _
        // Predicated region
        $region17: #{tpu_custom_call.1} parent=11 // pred_check
          %p296 = pneg %p121
        $region18: #{tpu_custom_call.1} parent=11 // pred_check_branch
          %298 = sbr.rel (%p296) target = $region20
        $region19: #{tpu_custom_call.1} parent=11 // pred_region
          _
        $region20: #{tpu_custom_call.1} parent=11 // pred_fallthru
          _
        // Predicated region
        $region21: #{tpu_custom_call.1} parent=11 // pred_check
          %p299 = pneg %p142
        $region22: #{tpu_custom_call.1} parent=11 // pred_check_branch
          %301 = sbr.rel (%p299) target = $region24
        $region23: #{tpu_custom_call.1} parent=11 // pred_region
          _
        $region24: #{tpu_custom_call.1} parent=11 // pred_fallthru
          _
        // Predicated region
        $region25: #{tpu_custom_call.1} parent=11 // pred_check
          %p302 = pneg %p163
        $region26: #{tpu_custom_call.1} parent=11 // pred_check_branch
          %304 = sbr.rel (%p302) target = $region28
        $region27: #{tpu_custom_call.1} parent=11 // pred_region
          _
        $region28: #{tpu_custom_call.1} parent=11 // pred_fallthru
          _
        // Predicated region
        $region29: #{tpu_custom_call.1} parent=11 // pred_check
          %p305 = pneg %p184
        $region30: #{tpu_custom_call.1} parent=11 // pred_check_branch
          %307 = sbr.rel (%p305) target = $region32
        $region31: #{tpu_custom_call.1} parent=11 // pred_region
          _
        $region32: #{tpu_custom_call.1} parent=11 // pred_fallthru
          _
        // Predicated region
        $region33: #{tpu_custom_call.1} parent=11 // pred_check
          %p308 = pneg %p205
        $region34: #{tpu_custom_call.1} parent=11 // pred_check_branch
          %310 = sbr.rel (%p308) target = $region36
        $region35: #{tpu_custom_call.1} parent=11 // pred_region
          _
        $region36: #{tpu_custom_call.1} parent=11 // pred_fallthru
          _
        // Predicated region
        $region37: #{tpu_custom_call.1} parent=11 // pred_check
          %p311 = pneg %p226
        $region38: #{tpu_custom_call.1} parent=11 // pred_check_branch
          %313 = sbr.rel (%p311) target = $region40
        $region39: #{tpu_custom_call.1} parent=11 // pred_region
          _
        $region40: #{tpu_custom_call.1} parent=11 // pred_fallthru
          _
      $region12: #{tpu_custom_call.1} parent=5 // pred_fallthru
        _
      %p314 = scmp.lt.s32.totalorder %s27, 2
      // Predicated region
      $region41: #{tpu_custom_call.1} parent=5 // pred_check
        %p315 = pneg %p314
      $region42: #{tpu_custom_call.1} parent=5 // pred_check_branch
        %317 = sbr.rel (%p315) target = $region44
      $region43: #{tpu_custom_call.1} parent=5 // pred_region
        // Predicated region
        $region45: #{tpu_custom_call.1} parent=43 // pred_check
          %p318 = pneg %p47
        $region46: #{tpu_custom_call.1} parent=43 // pred_check_branch
          %320 = sbr.rel (%p318) target = $region48
        $region47: #{tpu_custom_call.1} parent=43 // pred_region
          %s321 = sand.u32 %s37, 1
          %s322 = scalar_lea.sflag [#allocation5], %s321
          %s323 = sand.u32 %s37, 1
          %s324 = smul.addr %s323, 128
          %s325 = scalar_lea.vmem [#allocation4], %s324
          %s326 = smul.u32 8, %s27
          %328 = vsyncadd %s322, 0
          %s329 = smul.addr %s326, 2
          %s330 = smul.addr %s329, 8
          %s331 = scalar_lea.hbm %s0, %s330
          %s332 = sshll.u32 %s331, 4
          %s333 = int_to_ptr.hbm [resolvable:$true] %s332
          %s334 = sshll.u32 %s325, 4
          %s335 = int_to_ptr.vmem [resolvable:$true] %s334
          %340 = dma.hbm_to_vmem [thread:$0]  %s333, 2048, %s335, %s322, 128, 128, 8
        $region48: #{tpu_custom_call.1} parent=43 // pred_fallthru
          _
        // Predicated region
        $region49: #{tpu_custom_call.1} parent=43 // pred_check
          %p341 = pneg %p73
        $region50: #{tpu_custom_call.1} parent=43 // pred_check_branch
          %343 = sbr.rel (%p341) target = $region52
        $region51: #{tpu_custom_call.1} parent=43 // pred_region
          %s344 = smul.u32 8, %s27
          %p345 = scmp.lt.s32.totalorder %s344, 15
          %s346 = scalar_select %p345, %s344, 15
          %s347 = scalar_lea.vmem %s1, %s346
          %s348 = smul.u32 8, %s27
        $region52: #{tpu_custom_call.1} parent=43 // pred_fallthru
          _
      $region44: #{tpu_custom_call.1} parent=5 // pred_fallthru
        _
      %p349 = scmp.le.s32.totalorder 1, %s27
      %p350 = scmp.lt.s32.totalorder %s27, 3
      %p351 = pnand %p349, %p350
      %p352 = pneg %p351
      // Predicated region
      $region53: #{tpu_custom_call.1} parent=5 // pred_check
        _
      $region54: #{tpu_custom_call.1} parent=5 // pred_check_branch
        %354 = sbr.rel (%p351) target = $region56
      $region55: #{tpu_custom_call.1} parent=5 // pred_region
        %s355 = ssub.s32 %s27, 1
        %s356 = sand.u32 %s40, 1
        %s357 = scalar_lea.sflag [#allocation5], %s356
        %s358 = sand.u32 %s40, 1
        %s359 = smul.addr %s358, 128
        %s360 = scalar_lea.vmem [#allocation4], %s359
        // Predicated region
        $region57: #{tpu_custom_call.1} parent=55 // pred_check
          %p361 = pneg %p53
        $region58: #{tpu_custom_call.1} parent=55 // pred_check_branch
          %363 = sbr.rel (%p361) target = $region60
        $region59: #{tpu_custom_call.1} parent=55 // pred_region
          %365 = dma.done %s357, 2048
        $region60: #{tpu_custom_call.1} parent=55 // pred_fallthru
          _
        %s366 = sand.u32 %s40, 1
        %s367 = scalar_lea.sflag [#allocation5], %s366
        %s368 = sand.u32 %s40, 1
        %s369 = smul.addr %s368, 128
        %s370 = scalar_lea.vmem [#allocation4], %s369
        %p371 = pneg %p53
        %p372 = pneg %p50
        %s373 = smul.u32 8, %s32
        %p374 = scmp.lt.s32.totalorder %s373, 15
        %s375 = scalar_select %p374, %s373, 15
        %s376 = scalar_lea.vmem %s1, %s375
        %p377 = pneg %p79
        %p378 = pneg %p76
        %p379 = pneg %p100
        %p380 = pneg %p97
        %p381 = pneg %p121
        %p382 = pneg %p118
        %p383 = pneg %p142
        %p384 = pneg %p139
        %p385 = pneg %p163
        %p386 = pneg %p160
        %p387 = pneg %p184
        %p388 = pneg %p181
        %p389 = pneg %p205
        %p390 = pneg %p202
        %p391 = pneg %p226
        %p392 = pneg %p223
        %p393 = pneg %p252
        %p394 = pneg %p249
        %p395 = scmp.lt.s32.totalorder %s32, 1
        %s396 = scalar_select %p395, %s32, 1
        %s397 = smul.addr %s396, 8
        %s398 = scalar_lea.vmem %s9, %s397
        %p399 = pneg %p278
        %p400 = pneg %p275
        %s401 = sand.u32 %s265, 1
        %s402 = scalar_lea.sflag [#allocation6], %s401
        %s403 = sand.u32 %s265, 1
        %s404 = smul.addr %s403, 8
        %s405 = scalar_lea.vmem [#allocation7], %s404
        %s406 = smul.u32 8, %s32
        %s407 = smul.u32 8, %s32
        %p408 = scmp.lt.s32.totalorder %s407, 15
        %s409 = scalar_select %p408, %s407, 15
        %s410 = scalar_lea.vmem %s1, %s409
        %s411 = smul.u32 8, %s32
        %p412 = scmp.lt.s32.totalorder %s32, 1
        %s413 = scalar_select %p412, %s32, 1
        %s414 = smul.addr %s413, 8
        %s415 = scalar_lea.vmem %s9, %s414
        %v416 = vld [vmem:[%s360] sm:$0xff]
        %v417 = vld [vmem:[%s360 + $0x8] sm:$0xff]
        %v418 = vld [vmem:[%s360 + $0x10] sm:$0xff]
        %v419 = vld [vmem:[%s360 + $0x18] sm:$0xff]
        %v420 = vld [vmem:[%s360 + $0x20] sm:$0xff]
        %v421 = vld [vmem:[%s360 + $0x28] sm:$0xff]
        %v422 = vld [vmem:[%s360 + $0x30] sm:$0xff]
        %v423 = vld [vmem:[%s360 + $0x38] sm:$0xff]
        %v424 = vld [vmem:[%s360 + $0x40] sm:$0xff]
        %v425 = vld [vmem:[%s360 + $0x48] sm:$0xff]
        %v426 = vld [vmem:[%s360 + $0x50] sm:$0xff]
        %v427 = vld [vmem:[%s360 + $0x58] sm:$0xff]
        %v428 = vld [vmem:[%s360 + $0x60] sm:$0xff]
        %v429 = vld [vmem:[%s360 + $0x68] sm:$0xff]
        %v430 = vld [vmem:[%s360 + $0x70] sm:$0xff]
        %v431 = vld [vmem:[%s360 + $0x78] sm:$0xff]
        %v432 = vld [vmem:[%s2] sm:$0xff]
        %v433 = vld [vmem:[%s2 + $0x8] sm:$0xff]
        %v434 = vld [vmem:[%s2 + $0x10] sm:$0xff]
        %v435 = vld [vmem:[%s2 + $0x18] sm:$0xff]
        %v436 = vld [vmem:[%s3] sm:$0x1]
        %v438 = vperm.slane %v436, 0
        %vm440 = vcmask 261120
        %v442 = vsel %vm440, %v416, 0
        %v445 = vsel %vm440, %v417, 0
        %v448 = vsel %vm440, %v418, 0
        %v451 = vsel %vm440, %v419, 0
        %v454 = vsel %vm440, %v420, 0
        %v457 = vsel %vm440, %v421, 0
        %v460 = vsel %vm440, %v422, 0
        %v463 = vsel %vm440, %v423, 0
        %v466 = vsel %vm440, %v424, 0
        %v469 = vsel %vm440, %v425, 0
        %v472 = vsel %vm440, %v426, 0
        %v475 = vsel %vm440, %v427, 0
        %v478 = vsel %vm440, %v428, 0
        %v481 = vsel %vm440, %v429, 0
        %v484 = vsel %vm440, %v430, 0
        %v487 = vsel %vm440, %v431, 0
        %489 = vmatpush.msra.mxu0 0.0
        %490 = vmatpush.msra.mxu0 0.0
        %491 = vmatpush.msra.mxu0 0.0
        %492 = vmatpush.msra.mxu0 0.0
        %493 = vmatpush.msra.mxu0 0.0
        %494 = vmatpush.msra.mxu0 0.0
        %495 = vmatpush.msra.mxu0 0.0
        %496 = vmatpush.msra.mxu0 0.0
        %497 = vmatpush.msra.mxu0 0.0
        %498 = vmatpush.msra.mxu0 0.0
        %499 = vmatpush.msra.mxu0 0.0
        %500 = vmatpush.msra.mxu0 0.0
        %501 = vmatpush.msra.mxu0 %v435
        %502 = vmatpush.msra.mxu0 %v434
        %503 = vmatpush.msra.mxu0 %v433
        %504 = vmatpush.msra.mxu0 %v432
        %505 = vmatmul.f32.gmra.mxu0 %v442
        %v506 = vpop.f32.mrf.mxu0
        %v507 = vadd.f32 %v438, %v506
        %508 = vmatmul.f32.gmra.mxu0 %v445
        %v509 = vpop.f32.mrf.mxu0
        %v510 = vadd.f32 %v438, %v509
        %511 = vmatmul.f32.gmra.mxu0 %v448
        %v512 = vpop.f32.mrf.mxu0
        %v513 = vadd.f32 %v438, %v512
        %514 = vmatmul.f32.gmra.mxu0 %v451
        %v515 = vpop.f32.mrf.mxu0
        %v516 = vadd.f32 %v438, %v515
        %517 = vmatmul.f32.gmra.mxu0 %v454
        %v518 = vpop.f32.mrf.mxu0
        %v519 = vadd.f32 %v438, %v518
        %520 = vmatmul.f32.gmra.mxu0 %v457
        %v521 = vpop.f32.mrf.mxu0
        %v522 = vadd.f32 %v438, %v521
        %523 = vmatmul.f32.gmra.mxu0 %v460
        %v524 = vpop.f32.mrf.mxu0
        %v525 = vadd.f32 %v438, %v524
        %526 = vmatmul.f32.gmra.mxu0 %v463
        %v527 = vpop.f32.mrf.mxu0
        %v528 = vadd.f32 %v438, %v527
        %529 = vmatmul.f32.gmra.mxu0 %v466
        %v530 = vpop.f32.mrf.mxu0
        %v531 = vadd.f32 %v438, %v530
        %532 = vmatmul.f32.gmra.mxu0 %v469
        %v533 = vpop.f32.mrf.mxu0
        %v534 = vadd.f32 %v438, %v533
        %535 = vmatmul.f32.gmra.mxu0 %v472
        %v536 = vpop.f32.mrf.mxu0
        %v537 = vadd.f32 %v438, %v536
        %538 = vmatmul.f32.gmra.mxu0 %v475
        %v539 = vpop.f32.mrf.mxu0
        %v540 = vadd.f32 %v438, %v539
        %541 = vmatmul.f32.gmra.mxu0 %v478
        %v542 = vpop.f32.mrf.mxu0
        %v543 = vadd.f32 %v438, %v542
        %544 = vmatmul.f32.gmra.mxu0 %v481
        %v545 = vpop.f32.mrf.mxu0
        %v546 = vadd.f32 %v438, %v545
        %547 = vmatmul.f32.gmra.mxu0 %v484
        %v548 = vpop.f32.mrf.mxu0
        %v549 = vadd.f32 %v438, %v548
        %550 = vmatmul.f32.gmra.mxu0 %v487
        %v551 = vpop.f32.mrf.mxu0
        %v552 = vadd.f32 %v438, %v551
        %553 = vdwg.mxu0
        %v554 = vld [vmem:[%s4] sm:$0x1]
        %v555 = vld [vmem:[#allocation2] sm:$0x1]
        %557 = vset.pattern.permute.xlu0 0
        %558 = vperm.xlu0 %557, %v555
        %v559 = vpop.permute.xlu0 %558
        %v561 = vperm.slane %v559, 0
        %562 = vmatpush.xpose.msra.mxu0 0.0
        %563 = vmatpush.xpose.msra.mxu0 0.0
        %564 = vmatpush.xpose.msra.mxu0 0.0
        %565 = vmatpush.xpose.msra.mxu0 0.0
        %566 = vmatpush.xpose.msra.mxu0 0.0
        %567 = vmatpush.xpose.msra.mxu0 0.0
        %568 = vmatpush.xpose.msra.mxu0 0.0
        %569 = vmatpush.xpose.msra.mxu0 0.0
        %570 = vmatpush.xpose.msra.mxu0 0.0
        %571 = vmatpush.xpose.msra.mxu0 0.0
        %572 = vmatpush.xpose.msra.mxu0 0.0
        %573 = vmatpush.xpose.msra.mxu0 0.0
        %574 = vmatpush.xpose.msra.mxu0 0.0
        %575 = vmatpush.xpose.msra.mxu0 0.0
        %576 = vmatpush.xpose.msra.mxu0 %v510
        %577 = vmatpush.xpose.msra.mxu0 %v507
        %578 = vmatmul.f32.gmra.mxu0 %v554
        %v579 = vpop.f32.mrf.mxu0
        %v580 = vadd.f32 %v561, %v579
        %581 = vdwg.mxu0
        %582 = vmatpush.xpose.msra.mxu0 0.0
        %583 = vmatpush.xpose.msra.mxu0 0.0
        %584 = vmatpush.xpose.msra.mxu0 0.0
        %585 = vmatpush.xpose.msra.mxu0 0.0
        %586 = vmatpush.xpose.msra.mxu0 0.0
        %587 = vmatpush.xpose.msra.mxu0 0.0
        %588 = vmatpush.xpose.msra.mxu0 0.0
        %589 = vmatpush.xpose.msra.mxu0 0.0
        %590 = vmatpush.xpose.msra.mxu0 0.0
        %591 = vmatpush.xpose.msra.mxu0 0.0
        %592 = vmatpush.xpose.msra.mxu0 0.0
        %593 = vmatpush.xpose.msra.mxu0 0.0
        %594 = vmatpush.xpose.msra.mxu0 0.0
        %595 = vmatpush.xpose.msra.mxu0 0.0
        %596 = vmatpush.xpose.msra.mxu0 %v516
        %597 = vmatpush.xpose.msra.mxu0 %v513
        %598 = vmatmul.f32.gmra.mxu0 %v554
        %v599 = vpop.f32.mrf.mxu0
        %v600 = vadd.f32 %v561, %v599
        %601 = vdwg.mxu0
        %602 = vmatpush.xpose.msra.mxu0 0.0
        %603 = vmatpush.xpose.msra.mxu0 0.0
        %604 = vmatpush.xpose.msra.mxu0 0.0
        %605 = vmatpush.xpose.msra.mxu0 0.0
        %606 = vmatpush.xpose.msra.mxu0 0.0
        %607 = vmatpush.xpose.msra.mxu0 0.0
        %608 = vmatpush.xpose.msra.mxu0 0.0
        %609 = vmatpush.xpose.msra.mxu0 0.0
        %610 = vmatpush.xpose.msra.mxu0 0.0
        %611 = vmatpush.xpose.msra.mxu0 0.0
        %612 = vmatpush.xpose.msra.mxu0 0.0
        %613 = vmatpush.xpose.msra.mxu0 0.0
        %614 = vmatpush.xpose.msra.mxu0 0.0
        %615 = vmatpush.xpose.msra.mxu0 0.0
        %616 = vmatpush.xpose.msra.mxu0 %v522
        %617 = vmatpush.xpose.msra.mxu0 %v519
        %618 = vmatmul.f32.gmra.mxu0 %v554
        %v619 = vpop.f32.mrf.mxu0
        %v620 = vadd.f32 %v561, %v619
        %621 = vdwg.mxu0
        %622 = vmatpush.xpose.msra.mxu0 0.0
        %623 = vmatpush.xpose.msra.mxu0 0.0
        %624 = vmatpush.xpose.msra.mxu0 0.0
        %625 = vmatpush.xpose.msra.mxu0 0.0
        %626 = vmatpush.xpose.msra.mxu0 0.0
        %627 = vmatpush.xpose.msra.mxu0 0.0
        %628 = vmatpush.xpose.msra.mxu0 0.0
        %629 = vmatpush.xpose.msra.mxu0 0.0
        %630 = vmatpush.xpose.msra.mxu0 0.0
        %631 = vmatpush.xpose.msra.mxu0 0.0
        %632 = vmatpush.xpose.msra.mxu0 0.0
        %633 = vmatpush.xpose.msra.mxu0 0.0
        %634 = vmatpush.xpose.msra.mxu0 0.0
        %635 = vmatpush.xpose.msra.mxu0 0.0
        %636 = vmatpush.xpose.msra.mxu0 %v528
        %637 = vmatpush.xpose.msra.mxu0 %v525
        %638 = vmatmul.f32.gmra.mxu0 %v554
        %v639 = vpop.f32.mrf.mxu0
        %v640 = vadd.f32 %v561, %v639
        %641 = vdwg.mxu0
        %642 = vmatpush.xpose.msra.mxu0 0.0
        %643 = vmatpush.xpose.msra.mxu0 0.0
        %644 = vmatpush.xpose.msra.mxu0 0.0
        %645 = vmatpush.xpose.msra.mxu0 0.0
        %646 = vmatpush.xpose.msra.mxu0 0.0
        %647 = vmatpush.xpose.msra.mxu0 0.0
        %648 = vmatpush.xpose.msra.mxu0 0.0
        %649 = vmatpush.xpose.msra.mxu0 0.0
        %650 = vmatpush.xpose.msra.mxu0 0.0
        %651 = vmatpush.xpose.msra.mxu0 0.0
        %652 = vmatpush.xpose.msra.mxu0 0.0
        %653 = vmatpush.xpose.msra.mxu0 0.0
        %654 = vmatpush.xpose.msra.mxu0 0.0
        %655 = vmatpush.xpose.msra.mxu0 0.0
        %656 = vmatpush.xpose.msra.mxu0 %v534
        %657 = vmatpush.xpose.msra.mxu0 %v531
        %658 = vmatmul.f32.gmra.mxu0 %v554
        %v659 = vpop.f32.mrf.mxu0
        %v660 = vadd.f32 %v561, %v659
        %661 = vdwg.mxu0
        %662 = vmatpush.xpose.msra.mxu0 0.0
        %663 = vmatpush.xpose.msra.mxu0 0.0
        %664 = vmatpush.xpose.msra.mxu0 0.0
        %665 = vmatpush.xpose.msra.mxu0 0.0
        %666 = vmatpush.xpose.msra.mxu0 0.0
        %667 = vmatpush.xpose.msra.mxu0 0.0
        %668 = vmatpush.xpose.msra.mxu0 0.0
        %669 = vmatpush.xpose.msra.mxu0 0.0
        %670 = vmatpush.xpose.msra.mxu0 0.0
        %671 = vmatpush.xpose.msra.mxu0 0.0
        %672 = vmatpush.xpose.msra.mxu0 0.0
        %673 = vmatpush.xpose.msra.mxu0 0.0
        %674 = vmatpush.xpose.msra.mxu0 0.0
        %675 = vmatpush.xpose.msra.mxu0 0.0
        %676 = vmatpush.xpose.msra.mxu0 %v540
        %677 = vmatpush.xpose.msra.mxu0 %v537
        %678 = vmatmul.f32.gmra.mxu0 %v554
        %v679 = vpop.f32.mrf.mxu0
        %v680 = vadd.f32 %v561, %v679
        %681 = vdwg.mxu0
        %682 = vmatpush.xpose.msra.mxu0 0.0
        %683 = vmatpush.xpose.msra.mxu0 0.0
        %684 = vmatpush.xpose.msra.mxu0 0.0
        %685 = vmatpush.xpose.msra.mxu0 0.0
        %686 = vmatpush.xpose.msra.mxu0 0.0
        %687 = vmatpush.xpose.msra.mxu0 0.0
        %688 = vmatpush.xpose.msra.mxu0 0.0
        %689 = vmatpush.xpose.msra.mxu0 0.0
        %690 = vmatpush.xpose.msra.mxu0 0.0
        %691 = vmatpush.xpose.msra.mxu0 0.0
        %692 = vmatpush.xpose.msra.mxu0 0.0
        %693 = vmatpush.xpose.msra.mxu0 0.0
        %694 = vmatpush.xpose.msra.mxu0 0.0
        %695 = vmatpush.xpose.msra.mxu0 0.0
        %696 = vmatpush.xpose.msra.mxu0 %v546
        %697 = vmatpush.xpose.msra.mxu0 %v543
        %698 = vmatmul.f32.gmra.mxu0 %v554
        %v699 = vpop.f32.mrf.mxu0
        %v700 = vadd.f32 %v561, %v699
        %701 = vdwg.mxu0
        %702 = vmatpush.xpose.msra.mxu0 0.0
        %703 = vmatpush.xpose.msra.mxu0 0.0
        %704 = vmatpush.xpose.msra.mxu0 0.0
        %705 = vmatpush.xpose.msra.mxu0 0.0
        %706 = vmatpush.xpose.msra.mxu0 0.0
        %707 = vmatpush.xpose.msra.mxu0 0.0
        %708 = vmatpush.xpose.msra.mxu0 0.0
        %709 = vmatpush.xpose.msra.mxu0 0.0
        %710 = vmatpush.xpose.msra.mxu0 0.0
        %711 = vmatpush.xpose.msra.mxu0 0.0
        %712 = vmatpush.xpose.msra.mxu0 0.0
        %713 = vmatpush.xpose.msra.mxu0 0.0
        %714 = vmatpush.xpose.msra.mxu0 0.0
        %715 = vmatpush.xpose.msra.mxu0 0.0
        %716 = vmatpush.xpose.msra.mxu0 %v552
        %717 = vmatpush.xpose.msra.mxu0 %v549
        %718 = vmatmul.f32.gmra.mxu0 %v554
        %v719 = vpop.f32.mrf.mxu0
        %v720 = vadd.f32 %v561, %v719
        %721 = vdwg.mxu0
        %v722 = vld [vmem:[%s410] sm:$0x1]
        %v723 = vld [vmem:[%s410 + $0x1] sm:$0x1]
        %v724 = vld [vmem:[%s410 + $0x2] sm:$0x1]
        %v725 = vld [vmem:[%s410 + $0x3] sm:$0x1]
        %v726 = vld [vmem:[%s410 + $0x4] sm:$0x1]
        %v727 = vld [vmem:[%s410 + $0x5] sm:$0x1]
        %v728 = vld [vmem:[%s410 + $0x6] sm:$0x1]
        %v729 = vld [vmem:[%s410 + $0x7] sm:$0x1]
        %vm730 = vcmp.gt.f32.partialorder %v722, 0.5
        %vm731 = vcmp.gt.f32.partialorder %v723, 0.5
        %vm732 = vcmp.gt.f32.partialorder %v724, 0.5
        %vm733 = vcmp.gt.f32.partialorder %v725, 0.5
        %vm734 = vcmp.gt.f32.partialorder %v726, 0.5
        %vm735 = vcmp.gt.f32.partialorder %v727, 0.5
        %vm736 = vcmp.gt.f32.partialorder %v728, 0.5
        %vm737 = vcmp.gt.f32.partialorder %v729, 0.5
        %v738 = vsel %vm730, -inf, %v580
        %v739 = vsel %vm731, -inf, %v600
        %v740 = vsel %vm732, -inf, %v620
        %v741 = vsel %vm733, -inf, %v640
        %v742 = vsel %vm734, -inf, %v660
        %v743 = vsel %vm735, -inf, %v680
        %v744 = vsel %vm736, -inf, %v700
        %v745 = vsel %vm737, -inf, %v720
        %vm746 = vcmask 122880
        %v747 = vsel %vm746, %v738, -inf
        %748 = vmax.xlane.f32.xlu0 %v747
        %v749 = vpop.xlane.xlu0 %748
        %v750 = vsel %vm746, %v739, -inf
        %751 = vmax.xlane.f32.xlu0 %v750
        %v752 = vpop.xlane.xlu0 %751
        %v753 = vsel %vm746, %v740, -inf
        %754 = vmax.xlane.f32.xlu0 %v753
        %v755 = vpop.xlane.xlu0 %754
        %v756 = vsel %vm746, %v741, -inf
        %757 = vmax.xlane.f32.xlu0 %v756
        %v758 = vpop.xlane.xlu0 %757
        %v759 = vsel %vm746, %v742, -inf
        %760 = vmax.xlane.f32.xlu0 %v759
        %v761 = vpop.xlane.xlu0 %760
        %v762 = vsel %vm746, %v743, -inf
        %763 = vmax.xlane.f32.xlu0 %v762
        %v764 = vpop.xlane.xlu0 %763
        %v765 = vsel %vm746, %v744, -inf
        %766 = vmax.xlane.f32.xlu0 %v765
        %v767 = vpop.xlane.xlu0 %766
        %v768 = vsel %vm746, %v745, -inf
        %769 = vmax.xlane.f32.xlu0 %v768
        %v770 = vpop.xlane.xlu0 %769
        %v771 = vsub.f32 %v738, %v749
        %v772 = vsub.f32 %v739, %v752
        %v773 = vsub.f32 %v740, %v755
        %v774 = vsub.f32 %v741, %v758
        %v775 = vsub.f32 %v742, %v761
        %v776 = vsub.f32 %v743, %v764
        %v777 = vsub.f32 %v744, %v767
        %v778 = vsub.f32 %v745, %v770
        %v779 = vmul.f32 %v771, 1.442695
        %v780 = vpow.pop %v779
        %v781 = vmul.f32 %v772, 1.442695
        %v782 = vpow.pop %v781
        %v783 = vmul.f32 %v773, 1.442695
        %v784 = vpow.pop %v783
        %v785 = vmul.f32 %v774, 1.442695
        %v786 = vpow.pop %v785
        %v787 = vmul.f32 %v775, 1.442695
        %v788 = vpow.pop %v787
        %v789 = vmul.f32 %v776, 1.442695
        %v790 = vpow.pop %v789
        %v791 = vmul.f32 %v777, 1.442695
        %v792 = vpow.pop %v791
        %v793 = vmul.f32 %v778, 1.442695
        %v794 = vpow.pop %v793
        %v795 = vsel %vm746, %v780, 0.0
        %796 = vadd.xlane.f32.xlu0 %v795
        %v797 = vpop.xlane.xlu0 %796
        %v798 = vsel %vm746, %v782, 0.0
        %799 = vadd.xlane.f32.xlu0 %v798
        %v800 = vpop.xlane.xlu0 %799
        %v801 = vsel %vm746, %v784, 0.0
        %802 = vadd.xlane.f32.xlu0 %v801
        %v803 = vpop.xlane.xlu0 %802
        %v804 = vsel %vm746, %v786, 0.0
        %805 = vadd.xlane.f32.xlu0 %v804
        %v806 = vpop.xlane.xlu0 %805
        %v807 = vsel %vm746, %v788, 0.0
        %808 = vadd.xlane.f32.xlu0 %v807
        %v809 = vpop.xlane.xlu0 %808
        %v810 = vsel %vm746, %v790, 0.0
        %811 = vadd.xlane.f32.xlu0 %v810
        %v812 = vpop.xlane.xlu0 %811
        %v813 = vsel %vm746, %v792, 0.0
        %814 = vadd.xlane.f32.xlu0 %v813
        %v815 = vpop.xlane.xlu0 %814
        %v816 = vsel %vm746, %v794, 0.0
        %817 = vadd.xlane.f32.xlu0 %v816
        %v818 = vpop.xlane.xlu0 %817
        %v819 = vrcp.pop %v797
        %v820 = vmul.f32 %v797, %v819
        %v821 = vsub.f32 1.0, %v820
        %v822 = vmul.f32 %v819, %v821
        %v823 = vadd.f32 %v819, %v822
        %vm824 = vweird.f32 %v797
        %vm825 = vweird.f32 %v819
        %vm826 = vmor %vm824, %vm825
        %v827 = vsel %vm826, %v819, %v823
        %v828 = vand.u32 2147483647, %v797
        %vm829 = vcmp.eq.f32.partialorder %v828, 8.507059e+37
        %v830 = vand.u32 %v797, 2147483648
        %v831 = vor.u32 1.1754944e-38, %v830
        %v832 = vsel %vm829, %v831, %v827
        %v833 = vmul.f32 %v780, %v832
        %v834 = vrcp.pop %v800
        %v835 = vmul.f32 %v800, %v834
        %v836 = vsub.f32 1.0, %v835
        %v837 = vmul.f32 %v834, %v836
        %v838 = vadd.f32 %v834, %v837
        %vm839 = vweird.f32 %v800
        %vm840 = vweird.f32 %v834
        %vm841 = vmor %vm839, %vm840
        %v842 = vsel %vm841, %v834, %v838
        %v843 = vand.u32 2147483647, %v800
        %vm844 = vcmp.eq.f32.partialorder %v843, 8.507059e+37
        %v845 = vand.u32 %v800, 2147483648
        %v846 = vor.u32 1.1754944e-38, %v845
        %v847 = vsel %vm844, %v846, %v842
        %v848 = vmul.f32 %v782, %v847
        %v849 = vrcp.pop %v803
        %v850 = vmul.f32 %v803, %v849
        %v851 = vsub.f32 1.0, %v850
        %v852 = vmul.f32 %v849, %v851
        %v853 = vadd.f32 %v849, %v852
        %vm854 = vweird.f32 %v803
        %vm855 = vweird.f32 %v849
        %vm856 = vmor %vm854, %vm855
        %v857 = vsel %vm856, %v849, %v853
        %v858 = vand.u32 2147483647, %v803
        %vm859 = vcmp.eq.f32.partialorder %v858, 8.507059e+37
        %v860 = vand.u32 %v803, 2147483648
        %v861 = vor.u32 1.1754944e-38, %v860
        %v862 = vsel %vm859, %v861, %v857
        %v863 = vmul.f32 %v784, %v862
        %v864 = vrcp.pop %v806
        %v865 = vmul.f32 %v806, %v864
        %v866 = vsub.f32 1.0, %v865
        %v867 = vmul.f32 %v864, %v866
        %v868 = vadd.f32 %v864, %v867
        %vm869 = vweird.f32 %v806
        %vm870 = vweird.f32 %v864
        %vm871 = vmor %vm869, %vm870
        %v872 = vsel %vm871, %v864, %v868
        %v873 = vand.u32 2147483647, %v806
        %vm874 = vcmp.eq.f32.partialorder %v873, 8.507059e+37
        %v875 = vand.u32 %v806, 2147483648
        %v876 = vor.u32 1.1754944e-38, %v875
        %v877 = vsel %vm874, %v876, %v872
        %v878 = vmul.f32 %v786, %v877
        %v879 = vrcp.pop %v809
        %v880 = vmul.f32 %v809, %v879
        %v881 = vsub.f32 1.0, %v880
        %v882 = vmul.f32 %v879, %v881
        %v883 = vadd.f32 %v879, %v882
        %vm884 = vweird.f32 %v809
        %vm885 = vweird.f32 %v879
        %vm886 = vmor %vm884, %vm885
        %v887 = vsel %vm886, %v879, %v883
        %v888 = vand.u32 2147483647, %v809
        %vm889 = vcmp.eq.f32.partialorder %v888, 8.507059e+37
        %v890 = vand.u32 %v809, 2147483648
        %v891 = vor.u32 1.1754944e-38, %v890
        %v892 = vsel %vm889, %v891, %v887
        %v893 = vmul.f32 %v788, %v892
        %v894 = vrcp.pop %v812
        %v895 = vmul.f32 %v812, %v894
        %v896 = vsub.f32 1.0, %v895
        %v897 = vmul.f32 %v894, %v896
        %v898 = vadd.f32 %v894, %v897
        %vm899 = vweird.f32 %v812
        %vm900 = vweird.f32 %v894
        %vm901 = vmor %vm899, %vm900
        %v902 = vsel %vm901, %v894, %v898
        %v903 = vand.u32 2147483647, %v812
        %vm904 = vcmp.eq.f32.partialorder %v903, 8.507059e+37
        %v905 = vand.u32 %v812, 2147483648
        %v906 = vor.u32 1.1754944e-38, %v905
        %v907 = vsel %vm904, %v906, %v902
        %v908 = vmul.f32 %v790, %v907
        %v909 = vrcp.pop %v815
        %v910 = vmul.f32 %v815, %v909
        %v911 = vsub.f32 1.0, %v910
        %v912 = vmul.f32 %v909, %v911
        %v913 = vadd.f32 %v909, %v912
        %vm914 = vweird.f32 %v815
        %vm915 = vweird.f32 %v909
        %vm916 = vmor %vm914, %vm915
        %v917 = vsel %vm916, %v909, %v913
        %v918 = vand.u32 2147483647, %v815
        %vm919 = vcmp.eq.f32.partialorder %v918, 8.507059e+37
        %v920 = vand.u32 %v815, 2147483648
        %v921 = vor.u32 1.1754944e-38, %v920
        %v922 = vsel %vm919, %v921, %v917
        %v923 = vmul.f32 %v792, %v922
        %v924 = vrcp.pop %v818
        %v925 = vmul.f32 %v818, %v924
        %v926 = vsub.f32 1.0, %v925
        %v927 = vmul.f32 %v924, %v926
        %v928 = vadd.f32 %v924, %v927
        %vm929 = vweird.f32 %v818
        %vm930 = vweird.f32 %v924
        %vm931 = vmor %vm929, %vm930
        %v932 = vsel %vm931, %v924, %v928
        %v933 = vand.u32 2147483647, %v818
        %vm934 = vcmp.eq.f32.partialorder %v933, 8.507059e+37
        %v935 = vand.u32 %v818, 2147483648
        %v936 = vor.u32 1.1754944e-38, %v935
        %v937 = vsel %vm934, %v936, %v932
        %v938 = vmul.f32 %v794, %v937
        %947 = vst [vmem:[#allocation1] ss:$9 sm:$0xff] %v833
        %s948 = scalar_lea.vmem [#allocation1], 1
        %949 = vst [vmem:[%s948] ss:$9 sm:$0xff] %v848
        %s950 = scalar_lea.vmem [#allocation1], 2
        %951 = vst [vmem:[%s950] ss:$9 sm:$0xff] %v863
        %s952 = scalar_lea.vmem [#allocation1], 3
        %953 = vst [vmem:[%s952] ss:$9 sm:$0xff] %v878
        %s954 = scalar_lea.vmem [#allocation1], 4
        %955 = vst [vmem:[%s954] ss:$9 sm:$0xff] %v893
        %s956 = scalar_lea.vmem [#allocation1], 5
        %957 = vst [vmem:[%s956] ss:$9 sm:$0xff] %v908
        %s958 = scalar_lea.vmem [#allocation1], 6
        %959 = vst [vmem:[%s958] ss:$9 sm:$0xff] %v923
        %s960 = scalar_lea.vmem [#allocation1], 7
        %961 = vst [vmem:[%s960] ss:$9 sm:$0xff] %v938
        %v962 = vld [vmem:[#allocation1] sm:$0xff]
        %vm964 = vcmask 130048
        %965 = vst.msk [vmem:[%s405] sm:$0xff] %vm964, %v962
        %v966 = vsel %vm964, %v833, 0
        %968 = vmatpush.msra.mxu0 0.0
        %969 = vmatpush.msra.mxu0 0.0
        %970 = vmatpush.msra.mxu0 0.0
        %971 = vmatpush.msra.mxu0 0.0
        %972 = vmatpush.msra.mxu0 0.0
        %973 = vmatpush.msra.mxu0 0.0
        %974 = vmatpush.msra.mxu0 0.0
        %975 = vmatpush.msra.mxu0 0.0
        %976 = vmatpush.msra.mxu0 0.0
        %977 = vmatpush.msra.mxu0 0.0
        %978 = vmatpush.msra.mxu0 0.0
        %979 = vmatpush.msra.mxu0 0.0
        %980 = vmatpush.msra.mxu0 0.0
        %981 = vmatpush.msra.mxu0 0.0
        %982 = vmatpush.msra.mxu0 %v510
        %983 = vmatpush.msra.mxu0 %v507
        %984 = vmatmul.f32.gmra.mxu0 %v966
        %v985 = vpop.f32.mrf.mxu0
        %v986 = vadd.f32 0.0, %v985
        %987 = vdwg.mxu0
        %v988 = vsel %vm964, %v848, 0
        %990 = vmatpush.msra.mxu0 0.0
        %991 = vmatpush.msra.mxu0 0.0
        %992 = vmatpush.msra.mxu0 0.0
        %993 = vmatpush.msra.mxu0 0.0
        %994 = vmatpush.msra.mxu0 0.0
        %995 = vmatpush.msra.mxu0 0.0
        %996 = vmatpush.msra.mxu0 0.0
        %997 = vmatpush.msra.mxu0 0.0
        %998 = vmatpush.msra.mxu0 0.0
        %999 = vmatpush.msra.mxu0 0.0
        %1000 = vmatpush.msra.mxu0 0.0
        %1001 = vmatpush.msra.mxu0 0.0
        %1002 = vmatpush.msra.mxu0 0.0
        %1003 = vmatpush.msra.mxu0 0.0
        %1004 = vmatpush.msra.mxu0 %v516
        %1005 = vmatpush.msra.mxu0 %v513
        %1006 = vmatmul.f32.gmra.mxu0 %v988
        %v1007 = vpop.f32.mrf.mxu0
        %v1008 = vadd.f32 0.0, %v1007
        %1009 = vdwg.mxu0
        %v1010 = vsel %vm964, %v863, 0
        %1012 = vmatpush.msra.mxu0 0.0
        %1013 = vmatpush.msra.mxu0 0.0
        %1014 = vmatpush.msra.mxu0 0.0
        %1015 = vmatpush.msra.mxu0 0.0
        %1016 = vmatpush.msra.mxu0 0.0
        %1017 = vmatpush.msra.mxu0 0.0
        %1018 = vmatpush.msra.mxu0 0.0
        %1019 = vmatpush.msra.mxu0 0.0
        %1020 = vmatpush.msra.mxu0 0.0
        %1021 = vmatpush.msra.mxu0 0.0
        %1022 = vmatpush.msra.mxu0 0.0
        %1023 = vmatpush.msra.mxu0 0.0
        %1024 = vmatpush.msra.mxu0 0.0
        %1025 = vmatpush.msra.mxu0 0.0
        %1026 = vmatpush.msra.mxu0 %v522
        %1027 = vmatpush.msra.mxu0 %v519
        %1028 = vmatmul.f32.gmra.mxu0 %v1010
        %v1029 = vpop.f32.mrf.mxu0
        %v1030 = vadd.f32 0.0, %v1029
        %1031 = vdwg.mxu0
        %v1032 = vsel %vm964, %v878, 0
        %1034 = vmatpush.msra.mxu0 0.0
        %1035 = vmatpush.msra.mxu0 0.0
        %1036 = vmatpush.msra.mxu0 0.0
        %1037 = vmatpush.msra.mxu0 0.0
        %1038 = vmatpush.msra.mxu0 0.0
        %1039 = vmatpush.msra.mxu0 0.0
        %1040 = vmatpush.msra.mxu0 0.0
        %1041 = vmatpush.msra.mxu0 0.0
        %1042 = vmatpush.msra.mxu0 0.0
        %1043 = vmatpush.msra.mxu0 0.0
        %1044 = vmatpush.msra.mxu0 0.0
        %1045 = vmatpush.msra.mxu0 0.0
        %1046 = vmatpush.msra.mxu0 0.0
        %1047 = vmatpush.msra.mxu0 0.0
        %1048 = vmatpush.msra.mxu0 %v528
        %1049 = vmatpush.msra.mxu0 %v525
        %1050 = vmatmul.f32.gmra.mxu0 %v1032
        %v1051 = vpop.f32.mrf.mxu0
        %v1052 = vadd.f32 0.0, %v1051
        %1053 = vdwg.mxu0
        %v1054 = vsel %vm964, %v893, 0
        %1056 = vmatpush.msra.mxu0 0.0
        %1057 = vmatpush.msra.mxu0 0.0
        %1058 = vmatpush.msra.mxu0 0.0
        %1059 = vmatpush.msra.mxu0 0.0
        %1060 = vmatpush.msra.mxu0 0.0
        %1061 = vmatpush.msra.mxu0 0.0
        %1062 = vmatpush.msra.mxu0 0.0
        %1063 = vmatpush.msra.mxu0 0.0
        %1064 = vmatpush.msra.mxu0 0.0
        %1065 = vmatpush.msra.mxu0 0.0
        %1066 = vmatpush.msra.mxu0 0.0
        %1067 = vmatpush.msra.mxu0 0.0
        %1068 = vmatpush.msra.mxu0 0.0
        %1069 = vmatpush.msra.mxu0 0.0
        %1070 = vmatpush.msra.mxu0 %v534
        %1071 = vmatpush.msra.mxu0 %v531
        %1072 = vmatmul.f32.gmra.mxu0 %v1054
        %v1073 = vpop.f32.mrf.mxu0
        %v1074 = vadd.f32 0.0, %v1073
        %1075 = vdwg.mxu0
        %v1076 = vsel %vm964, %v908, 0
        %1078 = vmatpush.msra.mxu0 0.0
        %1079 = vmatpush.msra.mxu0 0.0
        %1080 = vmatpush.msra.mxu0 0.0
        %1081 = vmatpush.msra.mxu0 0.0
        %1082 = vmatpush.msra.mxu0 0.0
        %1083 = vmatpush.msra.mxu0 0.0
        %1084 = vmatpush.msra.mxu0 0.0
        %1085 = vmatpush.msra.mxu0 0.0
        %1086 = vmatpush.msra.mxu0 0.0
        %1087 = vmatpush.msra.mxu0 0.0
        %1088 = vmatpush.msra.mxu0 0.0
        %1089 = vmatpush.msra.mxu0 0.0
        %1090 = vmatpush.msra.mxu0 0.0
        %1091 = vmatpush.msra.mxu0 0.0
        %1092 = vmatpush.msra.mxu0 %v540
        %1093 = vmatpush.msra.mxu0 %v537
        %1094 = vmatmul.f32.gmra.mxu0 %v1076
        %v1095 = vpop.f32.mrf.mxu0
        %v1096 = vadd.f32 0.0, %v1095
        %1097 = vdwg.mxu0
        %v1098 = vsel %vm964, %v923, 0
        %1100 = vmatpush.msra.mxu0 0.0
        %1101 = vmatpush.msra.mxu0 0.0
        %1102 = vmatpush.msra.mxu0 0.0
        %1103 = vmatpush.msra.mxu0 0.0
        %1104 = vmatpush.msra.mxu0 0.0
        %1105 = vmatpush.msra.mxu0 0.0
        %1106 = vmatpush.msra.mxu0 0.0
        %1107 = vmatpush.msra.mxu0 0.0
        %1108 = vmatpush.msra.mxu0 0.0
        %1109 = vmatpush.msra.mxu0 0.0
        %1110 = vmatpush.msra.mxu0 0.0
        %1111 = vmatpush.msra.mxu0 0.0
        %1112 = vmatpush.msra.mxu0 0.0
        %1113 = vmatpush.msra.mxu0 0.0
        %1114 = vmatpush.msra.mxu0 %v546
        %1115 = vmatpush.msra.mxu0 %v543
        %1116 = vmatmul.f32.gmra.mxu0 %v1098
        %v1117 = vpop.f32.mrf.mxu0
        %v1118 = vadd.f32 0.0, %v1117
        %1119 = vdwg.mxu0
        %v1120 = vsel %vm964, %v938, 0
        %1122 = vmatpush.msra.mxu0 0.0
        %1123 = vmatpush.msra.mxu0 0.0
        %1124 = vmatpush.msra.mxu0 0.0
        %1125 = vmatpush.msra.mxu0 0.0
        %1126 = vmatpush.msra.mxu0 0.0
        %1127 = vmatpush.msra.mxu0 0.0
        %1128 = vmatpush.msra.mxu0 0.0
        %1129 = vmatpush.msra.mxu0 0.0
        %1130 = vmatpush.msra.mxu0 0.0
        %1131 = vmatpush.msra.mxu0 0.0
        %1132 = vmatpush.msra.mxu0 0.0
        %1133 = vmatpush.msra.mxu0 0.0
        %1134 = vmatpush.msra.mxu0 0.0
        %1135 = vmatpush.msra.mxu0 0.0
        %1136 = vmatpush.msra.mxu0 %v552
        %1137 = vmatpush.msra.mxu0 %v549
        %1138 = vmatmul.f32.gmra.mxu0 %v1120
        %v1139 = vpop.f32.mrf.mxu0
        %v1140 = vadd.f32 0.0, %v1139
        %1141 = vdwg.mxu0
        %v1142 = vld [vmem:[%s6] sm:$0x1]
        %v1144 = vperm.slane %v1142, 0
        %v1146 = vadd.f32 %v986, %v1144
        %v1147 = vadd.f32 %v1008, %v1144
        %v1148 = vadd.f32 %v1030, %v1144
        %v1149 = vadd.f32 %v1052, %v1144
        %v1150 = vadd.f32 %v1074, %v1144
        %v1151 = vadd.f32 %v1096, %v1144
        %v1152 = vadd.f32 %v1118, %v1144
        %v1153 = vadd.f32 %v1140, %v1144
        %v1154 = vld [vmem:[%s7] sm:$0xff]
        %v1155 = vld [vmem:[%s7 + $0x8] sm:$0xff]
        %v1156 = vld [vmem:[%s7 + $0x10] sm:$0xff]
        %v1157 = vld [vmem:[%s7 + $0x18] sm:$0xff]
        %v1158 = vld [vmem:[%s7 + $0x20] sm:$0xff]
        %v1159 = vld [vmem:[%s7 + $0x28] sm:$0xff]
        %v1160 = vld [vmem:[%s7 + $0x30] sm:$0xff]
        %v1161 = vld [vmem:[%s7 + $0x38] sm:$0xff]
        %v1162 = vld [vmem:[%s7 + $0x40] sm:$0xff]
        %v1163 = vld [vmem:[%s7 + $0x48] sm:$0xff]
        %v1164 = vld [vmem:[%s7 + $0x50] sm:$0xff]
        %v1165 = vld [vmem:[%s7 + $0x58] sm:$0xff]
        %v1166 = vld [vmem:[%s7 + $0x60] sm:$0xff]
        %v1167 = vld [vmem:[%s7 + $0x68] sm:$0xff]
        %v1168 = vld [vmem:[%s7 + $0x70] sm:$0xff]
        %v1169 = vld [vmem:[%s7 + $0x78] sm:$0xff]
        %v1170 = vld [vmem:[#allocation3] sm:$0x1]
        %v1172 = vperm.slane %v1170, 0
        %v1182 = vrot.slane %v1147, 7
        %vm1183 = vcmask 1041409
        %v1184 = vsel %vm1183, %v1182, %v1146
        %v1185 = vrot.slane %v1148, 6
        %vm1186 = vcmask 1042434
        %v1187 = vsel %vm1186, %v1185, %v1184
        %v1188 = vrot.slane %v1149, 5
        %vm1189 = vcmask 1043459
        %v1190 = vsel %vm1189, %v1188, %v1187
        %v1191 = vrot.slane %v1150, 4
        %vm1192 = vcmask 1044484
        %v1193 = vsel %vm1192, %v1191, %v1190
        %v1194 = vrot.slane %v1151, 3
        %vm1195 = vcmask 1045509
        %v1196 = vsel %vm1195, %v1194, %v1193
        %v1197 = vrot.slane %v1152, 2
        %vm1198 = vcmask 1046534
        %v1199 = vsel %vm1198, %v1197, %v1196
        %v1200 = vrot.slane %v1153, 1
        %vm1201 = vcmask 1047559
        %v1202 = vsel %vm1201, %v1200, %v1199
        %1204 = vmatpush.msra.mxu0 %v1169
        %1205 = vmatpush.msra.mxu0 %v1168
        %1206 = vmatpush.msra.mxu0 %v1167
        %1207 = vmatpush.msra.mxu0 %v1166
        %1208 = vmatpush.msra.mxu0 %v1165
        %1209 = vmatpush.msra.mxu0 %v1164
        %1210 = vmatpush.msra.mxu0 %v1163
        %1211 = vmatpush.msra.mxu0 %v1162
        %1212 = vmatpush.msra.mxu0 %v1161
        %1213 = vmatpush.msra.mxu0 %v1160
        %1214 = vmatpush.msra.mxu0 %v1159
        %1215 = vmatpush.msra.mxu0 %v1158
        %1216 = vmatpush.msra.mxu0 %v1157
        %1217 = vmatpush.msra.mxu0 %v1156
        %1218 = vmatpush.msra.mxu0 %v1155
        %1219 = vmatpush.msra.mxu0 %v1154
        %1220 = vmatmul.f32.gmra.mxu0 %v1202
        %v1221 = vpop.f32.mrf.mxu0
        %v1222 = vadd.f32 %v1172, %v1221
        %1223 = vdwg.mxu0
        %vm1224 = vcmask 7168
        %1225 = vst.msk [vmem:[%s415] sm:$0xff] %vm1224, %v1222
        %p1226 = scmp.lt.s32.totalorder %s32, 1
        %s1227 = scalar_select %p1226, %s32, 1
        %s1228 = smul.addr %s1227, 8
        %s1229 = scalar_lea.vmem %s9, %s1228
        %s1230 = sand.u32 %s265, 1
        %s1231 = scalar_lea.sflag [#allocation6], %s1230
        %s1232 = sand.u32 %s265, 1
        %s1233 = smul.addr %s1232, 8
        %s1234 = scalar_lea.vmem [#allocation7], %s1233
        // Predicated region
        $region61: #{tpu_custom_call.1} parent=55 // pred_check
          %p1235 = pneg %p249
        $region62: #{tpu_custom_call.1} parent=55 // pred_check_branch
          %1237 = sbr.rel (%p1235) target = $region64
        $region63: #{tpu_custom_call.1} parent=55 // pred_region
          _
        $region64: #{tpu_custom_call.1} parent=55 // pred_fallthru
          _
        // Predicated region
        $region65: #{tpu_custom_call.1} parent=55 // pred_check
          %p1238 = pneg %p275
        $region66: #{tpu_custom_call.1} parent=55 // pred_check_branch
          %1240 = sbr.rel (%p1238) target = $region68
        $region67: #{tpu_custom_call.1} parent=55 // pred_region
          %1242 = vsyncadd %s1231, 0
          %s1243 = smul.addr %s32, 8
          %s1244 = scalar_lea.hbm %s10, %s1243
          %s1246 = sshll.u32 %s1234, 4
          %s1247 = int_to_ptr.vmem [resolvable:$true] %s1246
          %s1248 = sshll.u32 %s1244, 4
          %s1249 = int_to_ptr.hbm [resolvable:$true] %s1248
          %1251 = dma.vmem_to_hbm [thread:$0]  %s1247, 128, %s1249, %s1231
        $region68: #{tpu_custom_call.1} parent=55 // pred_fallthru
          _
      $region56: #{tpu_custom_call.1} parent=5 // pred_fallthru
        _
      %p1252 = scmp.le.s32.totalorder 2, %s27
      // Predicated region
      $region69: #{tpu_custom_call.1} parent=5 // pred_check
        %p1253 = pneg %p1252
      $region70: #{tpu_custom_call.1} parent=5 // pred_check_branch
        %1255 = sbr.rel (%p1253) target = $region72
      $region71: #{tpu_custom_call.1} parent=5 // pred_region
        %s1256 = ssub.s32 %s27, 2
        // Predicated region
        $region73: #{tpu_custom_call.1} parent=71 // pred_check
          %p1257 = pneg %p255
        $region74: #{tpu_custom_call.1} parent=71 // pred_check_branch
          %1259 = sbr.rel (%p1257) target = $region76
        $region75: #{tpu_custom_call.1} parent=71 // pred_region
          %p1260 = scmp.lt.s32.totalorder %s33, 1
          %s1261 = scalar_select %p1260, %s33, 1
          %s1262 = smul.addr %s1261, 8
          %s1263 = scalar_lea.vmem %s9, %s1262
        $region76: #{tpu_custom_call.1} parent=71 // pred_fallthru
          _
        // Predicated region
        $region77: #{tpu_custom_call.1} parent=71 // pred_check
          %p1264 = pneg %p281
        $region78: #{tpu_custom_call.1} parent=71 // pred_check_branch
          %1266 = sbr.rel (%p1264) target = $region80
        $region79: #{tpu_custom_call.1} parent=71 // pred_region
          %s1267 = sand.u32 %s266, 1
          %s1268 = scalar_lea.sflag [#allocation6], %s1267
          %s1269 = sand.u32 %s266, 1
          %s1270 = smul.addr %s1269, 8
          %s1271 = scalar_lea.vmem [#allocation7], %s1270
          %1273 = dma.done %s1268, 128
        $region80: #{tpu_custom_call.1} parent=71 // pred_fallthru
          _
      $region72: #{tpu_custom_call.1} parent=5 // pred_fallthru
        _
    $region6: #{tpu_custom_call.1} parent=1 // loop_footer
      %s31 = sadd.s32 1, %s27
    $region7: #{tpu_custom_call.1} parent=1 // loop_footer_branch
      %26 = sbr.rel target = $region3
    $region8: #{tpu_custom_call.1} parent=1 // loop_exit
      _
    %1274 = vsyncpa [#allocation5], 1
    %s1275 = scalar_lea.sflag [#allocation5], 1
    %1276 = vsyncpa %s1275, 1
    %1277 = vsyncpa [#allocation6], 1
    %s1278 = scalar_lea.sflag [#allocation6], 1
    %1279 = vsyncpa %s1278, 1

</llo_original>
